<compile_context>
chip_gen: v7x
topology: tpu7x:2x2x1
jax: 0.10.0
libtpu: 0.0.40
codegen_flags: <defaults>
</compile_context>

<pallas_src>
import jax
import jax.numpy as jnp
from jax.experimental import pallas as pl
from jax.experimental.pallas import tpu as pltpu

H1, H2 = 100, 50          # logical hidden sizes of the per-feature MLPs
PH1 = 128                 # per-branch padded hidden-1 width
PK = 2 * PH1              # fused fc1/fc2 K width: non_linear lanes 0..99, time lanes 128..227
PH2 = 128                 # fused fc2 output lanes: non_linear cols 0..49, time cols 64..113
NL_OFF = 0                # column offset of non_linear block in fused fc2 output
NLT_OFF = 64              # column offset of non_linear_time block in fused fc2 output
MAX_BATCH_TILE = 1024     # rows per grid step (amortizes ~0.35us per-step overhead)


def _round_up(v, m):
    return ((v + m - 1) // m) * m


def _make_kernel(nfeat):
    def kernel(x_ref, wlin_ref, w1a_ref, w1b_ref, b1_ref, w2_ref, b2_ref, w3_ref,
               flin_ref, fnl_ref, fnlt_ref, sum_ref):
        x = x_ref[...]                                # (BT, nfeat+1), lane-dense input
        xt = x[:, nfeat:nfeat + 1]                    # time covariate, (BT, 1)

        # ---- linear branch: one VPU broadcast multiply ----
        flin = x[:, :nfeat] * wlin_ref[...]           # (BT, nfeat) * (1, nfeat)

        # Lane-packed accumulators for the two non-linear branches.
        lane = jax.lax.broadcasted_iota(jnp.int32, flin.shape, 1)   # (BT, nfeat)
        fnl = jnp.zeros_like(flin)
        fnlt = jnp.zeros_like(flin)

        # TODO(synk): for large nfeat, stream features via a second ("arbitrary") grid
        # axis (weights per feature through BlockSpec) instead of this unrolled loop.
        for f in range(nfeat):                        # nfeat is small & static -> unrolled
            xf = x[:, f:f + 1]                        # (BT, 1)

            # Fused fc1 of both branches: lanes 0..99 = non_linear hidden,
            # lanes 128..227 = non_linear_time hidden (time weight is zero in 0..127).
            h = xf * w1a_ref[f:f + 1, :] + xt * w1b_ref[f:f + 1, :] + b1_ref[f:f + 1, :]
            h = jnp.maximum(h, 0.0)                   # (BT, 256)

            # Fused fc2: single K=256 MXU matmul against a block-diagonal weight.
            h2 = jnp.dot(h, w2_ref[f], preferred_element_type=jnp.float32)
            h2 = jnp.maximum(h2 + b2_ref[f:f + 1, :], 0.0)   # (BT, 128)

            # Fused fc3 (no bias): VPU multiply + two half-lane (XLU) reductions.
            prod = h2 * w3_ref[f:f + 1, :]
            nl_f = jnp.sum(prod[:, :NLT_OFF], axis=-1, keepdims=True)    # (BT, 1)
            nlt_f = jnp.sum(prod[:, NLT_OFF:], axis=-1, keepdims=True)   # (BT, 1)

            # Pack feature f's scalars into lane f (no narrow column stores).
            fnl = jnp.where(lane == f, nl_f, fnl)
            fnlt = jnp.where(lane == f, nlt_f, fnlt)

        # One store per output per tile; the total is a single lane reduction.
        flin_ref[...] = flin
        fnl_ref[...] = fnl
        fnlt_ref[...] = fnlt
        sum_ref[...] = jnp.sum(flin + fnl + fnlt, axis=-1, keepdims=True)

    return kernel


@jax.jit
def survival_forward(x, packed_params):
    """x: (N, nfeat+1) -> (output (N,), f_linear (N,nfeat), f_non_linear (N,nfeat),
    f_non_linear_time (N,nfeat)), matching the torch module's return tuple."""
    x = jnp.asarray(x, jnp.float32)
    n, f1 = x.shape
    nfeat = f1 - 1

    # Batch tile: large to amortize per-step overhead; for batches bigger than half the
    # cap, force >= 2 grid steps so both v7x TensorCores get work.
    bt = min(MAX_BATCH_TILE, _round_up(max(n, 8), 8))
    if n > MAX_BATCH_TILE // 2:
        bt = min(bt, _round_up((n + 1) // 2, 8))
    n_pad = _round_up(n, bt)
    xp = x if n_pad == n else jnp.zeros((n_pad, f1), jnp.float32).at[:n].set(x)

    grid = (n_pad // bt,)
    tile_map = lambda i: (i, 0)
    const2 = lambda i: (0, 0)
    const3 = lambda i: (0, 0, 0)

    out_shapes = (
        jax.ShapeDtypeStruct((n_pad, nfeat), jnp.float32),   # f_linear
        jax.ShapeDtypeStruct((n_pad, nfeat), jnp.float32),   # f_non_linear
        jax.ShapeDtypeStruct((n_pad, nfeat), jnp.float32),   # f_non_linear_time
        jax.ShapeDtypeStruct((n_pad, 1), jnp.float32),       # summed output
    )
    in_specs = [
        pl.BlockSpec((bt, f1), tile_map),                    # x tile (feature dim unpadded)
        pl.BlockSpec((1, nfeat), const2),                    # w_lin
        pl.BlockSpec((nfeat, PK), const2),                   # fused fc1 weight (feature input)
        pl.BlockSpec((nfeat, PK), const2),                   # fused fc1 weight (time input)
        pl.BlockSpec((nfeat, PK), const2),                   # fused fc1 bias
        pl.BlockSpec((nfeat, PK, PH2), const3),              # fused block-diag fc2 weight
        pl.BlockSpec((nfeat, PH2), const2),                  # fused fc2 bias
        pl.BlockSpec((nfeat, PH2), const2),                  # fused fc3 weight
    ]
    out_specs = (
        pl.BlockSpec((bt, nfeat), tile_map),
        pl.BlockSpec((bt, nfeat), tile_map),
        pl.BlockSpec((bt, nfeat), tile_map),
        pl.BlockSpec((bt, 1), tile_map),
    )

    flin, fnl, fnlt, total = pl.pallas_call(
        _make_kernel(nfeat),
        out_shape=out_shapes,
        grid_spec=pltpu.PrefetchScalarGridSpec(
            num_scalar_prefetch=0,
            grid=grid,
            in_specs=in_specs,
            out_specs=out_specs,
        ),
        compiler_params=pltpu.CompilerParams(
            dimension_semantics=("parallel",),
            vmem_limit_bytes=32 * 1024 * 1024,
        ),
    )(xp, *packed_params)

    return total[:n, 0], flin[:n], fnl[:n], fnlt[:n]


def init_params(key, nfeat):
    """Deterministic init mimicking nn.Linear's U(-1/sqrt(fan_in), 1/sqrt(fan_in)).
    Weights stored as (in, out) / rows so y = x @ W + b directly."""
    def u(k, shape, fan_in):
        bound = float(fan_in) ** -0.5
        return jax.random.uniform(k, shape, jnp.float32, -bound, bound)

    keys = jax.random.split(key, 11)
    return dict(
        w_lin=u(keys[0], (nfeat,), 1),             # linear[i].fc1.weight (1,1)
        w1n=u(keys[1], (nfeat, H1), 1),            # non_linear fc1 weight (100,1) -> row
        b1n=u(keys[2], (nfeat, H1), 1),
        w2n=u(keys[3], (nfeat, H1, H2), H1),       # fc2 weight.T per feature
        b2n=u(keys[4], (nfeat, H2), H1),
        w3n=u(keys[5], (nfeat, H2), H2),           # fc3 weight (1,50) -> row, no bias
        w1t=u(keys[6], (nfeat, 2, H1), 2),         # non_linear_time fc1 weight.T
        b1t=u(keys[7], (nfeat, H1), 2),
        w2t=u(keys[8], (nfeat, H1, H2), H1),
        b2t=u(keys[9], (nfeat, H2), H1),
        w3t=u(keys[10], (nfeat, H2), H2),
    )


def pack_params(p, nfeat):
    """Zero-pad and pack both branches' weights into fused layouts, once per model.
    fc1/fc2 K layout: lanes/rows 0..99 = non_linear hidden, 128..227 = non_linear_time
    hidden.  fc2/fc3 output layout: cols 0..49 = non_linear, cols 64..113 = time."""
    f32 = jnp.float32
    wlin = jnp.asarray(p["w_lin"], f32).reshape(1, nfeat)

    w1a = jnp.zeros((nfeat, PK), f32)
    w1a = w1a.at[:, :H1].set(p["w1n"]).at[:, PH1:PH1 + H1].set(p["w1t"][:, 0, :])
    w1b = jnp.zeros((nfeat, PK), f32).at[:, PH1:PH1 + H1].set(p["w1t"][:, 1, :])
    b1 = jnp.zeros((nfeat, PK), f32)
    b1 = b1.at[:, :H1].set(p["b1n"]).at[:, PH1:PH1 + H1].set(p["b1t"])

    w2 = jnp.zeros((nfeat, PK, PH2), f32)
    w2 = w2.at[:, :H1, NL_OFF:NL_OFF + H2].set(p["w2n"])
    w2 = w2.at[:, PH1:PH1 + H1, NLT_OFF:NLT_OFF + H2].set(p["w2t"])
    b2 = jnp.zeros((nfeat, PH2), f32)
    b2 = b2.at[:, NL_OFF:NL_OFF + H2].set(p["b2n"]).at[:, NLT_OFF:NLT_OFF + H2].set(p["b2t"])

    w3 = jnp.zeros((nfeat, PH2), f32)
    w3 = w3.at[:, NL_OFF:NL_OFF + H2].set(p["w3n"]).at[:, NLT_OFF:NLT_OFF + H2].set(p["w3t"])

    return (wlin, w1a, w1b, b1, w2, b2, w3)


def _reference(x, p):
    """Pure-JAX reference with the same math as the torch module."""
    x = jnp.asarray(x, jnp.float32)
    nfeat = x.shape[1] - 1
    xt = x[:, nfeat:nfeat + 1]
    f_lin = x[:, :nfeat] * p["w_lin"][None, :]
    nl, nlt = [], []
    for f in range(nfeat):
        xf = x[:, f:f + 1]
        h1 = jnp.maximum(xf * p["w1n"][f][None, :] + p["b1n"][f][None, :], 0.0)
        h2 = jnp.maximum(h1 @ p["w2n"][f] + p["b2n"][f][None, :], 0.0)
        nl.append(jnp.sum(h2 * p["w3n"][f][None, :], axis=-1, keepdims=True))
        g1 = (xf * p["w1t"][f, 0][None, :] + xt * p["w1t"][f, 1][None, :]
              + p["b1t"][f][None, :])
        g1 = jnp.maximum(g1, 0.0)
        g2 = jnp.maximum(g1 @ p["w2t"][f] + p["b2t"][f][None, :], 0.0)
        nlt.append(jnp.sum(g2 * p["w3t"][f][None, :], axis=-1, keepdims=True))
    f_nl = jnp.concatenate(nl, axis=-1)
    f_nlt = jnp.concatenate(nlt, axis=-1)
    total = jnp.sum(f_lin + f_nl + f_nlt, axis=-1)
    return total, f_lin, f_nl, f_nlt


if __name__ == "__main__":
    key = jax.random.PRNGKey(0)
    k_x, k_p = jax.random.split(key)

    nfeat, n = 4, 16
    # x columns 0..nfeat-1 are features, column nfeat is the time covariate.
    x = jax.random.normal(k_x, (n, nfeat + 1), jnp.float32)
    params = init_params(k_p, nfeat)
    packed = pack_params(params, nfeat)

    total, f_lin, f_nl, f_nlt = survival_forward(x, packed)
    total = jax.block_until_ready(total)

    r_total, r_lin, r_nl, r_nlt = _reference(x, params)
    assert total.shape == (n,), total.shape
    assert f_lin.shape == (n, nfeat) and f_nl.shape == (n, nfeat) and f_nlt.shape == (n, nfeat)
    for got, ref in ((total, r_total), (f_lin, r_lin), (f_nl, r_nl), (f_nlt, r_nlt)):
        assert jnp.allclose(got, ref, atol=1e-4, rtol=1e-4), (got, ref)

    print("KERNEL_OK")
</pallas_src>

<mosaic_0001>
module attributes {stable_mosaic.version = 11 : i64} {
  func.func @kernel(%arg0: i32, %arg1: memref<16x5xf32, #tpu.memory_space<vmem>>, %arg2: memref<1x4xf32, #tpu.memory_space<vmem>>, %arg3: memref<4x256xf32, #tpu.memory_space<vmem>>, %arg4: memref<4x256xf32, #tpu.memory_space<vmem>>, %arg5: memref<4x256xf32, #tpu.memory_space<vmem>>, %arg6: memref<4x256x128xf32, #tpu.memory_space<vmem>>, %arg7: memref<4x128xf32, #tpu.memory_space<vmem>>, %arg8: memref<4x128xf32, #tpu.memory_space<vmem>>, %arg9: memref<16x4xf32, #tpu.memory_space<vmem>>, %arg10: memref<16x4xf32, #tpu.memory_space<vmem>>, %arg11: memref<16x4xf32, #tpu.memory_space<vmem>>, %arg12: memref<16x1xf32, #tpu.memory_space<vmem>>) attributes {dimension_semantics = [#tpu.dimension_semantics<parallel>], iteration_bounds = array<i64: 1>, scalar_prefetch = 0 : i64, scratch_operands = 0 : i64, tpu.core_type = #tpu.core_type<tc>, window_params = [{transform_indices = @transform_0, window_bounds = array<i64: 16, 5>}, {pipeline_mode = #tpu.pipeline_mode<synchronous>, transform_indices = @transform_1, window_bounds = array<i64: 1, 4>}, {pipeline_mode = #tpu.pipeline_mode<synchronous>, transform_indices = @transform_2, window_bounds = array<i64: 4, 256>}, {pipeline_mode = #tpu.pipeline_mode<synchronous>, transform_indices = @transform_3, window_bounds = array<i64: 4, 256>}, {pipeline_mode = #tpu.pipeline_mode<synchronous>, transform_indices = @transform_4, window_bounds = array<i64: 4, 256>}, {pipeline_mode = #tpu.pipeline_mode<synchronous>, transform_indices = @transform_5, window_bounds = array<i64: 4, 256, 128>}, {pipeline_mode = #tpu.pipeline_mode<synchronous>, transform_indices = @transform_6, window_bounds = array<i64: 4, 128>}, {pipeline_mode = #tpu.pipeline_mode<synchronous>, transform_indices = @transform_7, window_bounds = array<i64: 4, 128>}, {transform_indices = @transform_8, window_bounds = array<i64: 16, 4>}, {transform_indices = @transform_9, window_bounds = array<i64: 16, 4>}, {transform_indices = @transform_10, window_bounds = array<i64: 16, 4>}, {transform_indices = @transform_11, window_bounds = array<i64: 16, 1>}]} {
    %c0 = arith.constant 0 : index
    %c0_0 = arith.constant 0 : index
    %0 = vector.load %arg1[%c0, %c0_0] : memref<16x5xf32, #tpu.memory_space<vmem>>, vector<16x5xf32>
    %1 = vector.extract_strided_slice %0 {offsets = [0, 4], sizes = [16, 1], strides = [1, 1]} : vector<16x5xf32> to vector<16x1xf32>
    %2 = vector.extract_strided_slice %0 {offsets = [0, 0], sizes = [16, 4], strides = [1, 1]} : vector<16x5xf32> to vector<16x4xf32>
    %c0_1 = arith.constant 0 : index
    %c0_2 = arith.constant 0 : index
    %3 = vector.load %arg2[%c0_1, %c0_2] : memref<1x4xf32, #tpu.memory_space<vmem>>, vector<1x4xf32>
    %4 = vector.broadcast %3 : vector<1x4xf32> to vector<16x4xf32>
    %5 = arith.mulf %2, %4 : vector<16x4xf32>
    %6 = tpu.iota {dimensions = array<i32: 1>} : vector<16x4xi32>
    %cst = arith.constant 0.000000e+00 : f32
    %7 = vector.broadcast %cst : f32 to vector<16x4xf32>
    %cst_3 = arith.constant 0.000000e+00 : f32
    %8 = vector.broadcast %cst_3 : f32 to vector<16x4xf32>
    %9 = vector.extract_strided_slice %0 {offsets = [0, 0], sizes = [16, 1], strides = [1, 1]} : vector<16x5xf32> to vector<16x1xf32>
    %c0_4 = arith.constant 0 : index
    %c0_5 = arith.constant 0 : index
    %10 = vector.load %arg3[%c0_4, %c0_5] : memref<4x256xf32, #tpu.memory_space<vmem>>, vector<1x256xf32>
    %11 = vector.broadcast %9 : vector<16x1xf32> to vector<16x256xf32>
    %12 = vector.broadcast %10 : vector<1x256xf32> to vector<16x256xf32>
    %13 = arith.mulf %11, %12 : vector<16x256xf32>
    %c0_6 = arith.constant 0 : index
    %c0_7 = arith.constant 0 : index
    %14 = vector.load %arg4[%c0_6, %c0_7] : memref<4x256xf32, #tpu.memory_space<vmem>>, vector<1x256xf32>
    %15 = vector.broadcast %1 : vector<16x1xf32> to vector<16x256xf32>
    %16 = vector.broadcast %14 : vector<1x256xf32> to vector<16x256xf32>
    %17 = arith.mulf %15, %16 : vector<16x256xf32>
    %18 = arith.addf %13, %17 : vector<16x256xf32>
    %c0_8 = arith.constant 0 : index
    %c0_9 = arith.constant 0 : index
    %19 = vector.load %arg5[%c0_8, %c0_9] : memref<4x256xf32, #tpu.memory_space<vmem>>, vector<1x256xf32>
    %20 = vector.broadcast %19 : vector<1x256xf32> to vector<16x256xf32>
    %21 = arith.addf %18, %20 : vector<16x256xf32>
    %cst_10 = arith.constant 0.000000e+00 : f32
    %22 = vector.broadcast %cst_10 : f32 to vector<16x256xf32>
    %23 = arith.maximumf %21, %22 : vector<16x256xf32>
    %c0_11 = arith.constant 0 : index
    %c0_12 = arith.constant 0 : index
    %c0_13 = arith.constant 0 : index
    %24 = vector.load %arg6[%c0_11, %c0_12, %c0_13] : memref<4x256x128xf32, #tpu.memory_space<vmem>>, vector<1x256x128xf32>
    %25 = vector.shape_cast %24 : vector<1x256x128xf32> to vector<256x128xf32>
    %cst_14 = arith.constant dense<0.000000e+00> : vector<16x128xf32>
    %26 = tpu.matmul %23, %25, %cst_14 {dimension_numbers = #tpu.dot_dimension_numbers<[1], [0], [0], [1], [0, 0, 1, 1], [], []>} : vector<16x256xf32>, vector<256x128xf32>, vector<16x128xf32> -> vector<16x128xf32>
    %c0_15 = arith.constant 0 : index
    %c0_16 = arith.constant 0 : index
    %27 = vector.load %arg7[%c0_15, %c0_16] : memref<4x128xf32, #tpu.memory_space<vmem>>, vector<1x128xf32>
    %28 = vector.broadcast %27 : vector<1x128xf32> to vector<16x128xf32>
    %29 = arith.addf %26, %28 : vector<16x128xf32>
    %cst_17 = arith.constant 0.000000e+00 : f32
    %30 = vector.broadcast %cst_17 : f32 to vector<16x128xf32>
    %31 = arith.maximumf %29, %30 : vector<16x128xf32>
    %c0_18 = arith.constant 0 : index
    %c0_19 = arith.constant 0 : index
    %32 = vector.load %arg8[%c0_18, %c0_19] : memref<4x128xf32, #tpu.memory_space<vmem>>, vector<1x128xf32>
    %33 = vector.broadcast %32 : vector<1x128xf32> to vector<16x128xf32>
    %34 = arith.mulf %31, %33 : vector<16x128xf32>
    %35 = vector.extract_strided_slice %34 {offsets = [0, 0], sizes = [16, 64], strides = [1, 1]} : vector<16x128xf32> to vector<16x64xf32>
    %cst_20 = arith.constant dense<0.000000e+00> : vector<16xf32>
    %36 = vector.multi_reduction <add>, %35, %cst_20 [1] : vector<16x64xf32> to vector<16xf32>
    %37 = vector.shape_cast %36 : vector<16xf32> to vector<16x1xf32>
    %38 = vector.extract_strided_slice %34 {offsets = [0, 64], sizes = [16, 64], strides = [1, 1]} : vector<16x128xf32> to vector<16x64xf32>
    %cst_21 = arith.constant dense<0.000000e+00> : vector<16xf32>
    %39 = vector.multi_reduction <add>, %38, %cst_21 [1] : vector<16x64xf32> to vector<16xf32>
    %40 = vector.shape_cast %39 : vector<16xf32> to vector<16x1xf32>
    %c0_i32 = arith.constant 0 : i32
    %41 = vector.broadcast %c0_i32 : i32 to vector<16x4xi32>
    %42 = arith.cmpi eq, %6, %41 : vector<16x4xi32>
    %43 = vector.shape_cast %37 : vector<16x1xf32> to vector<16x1xf32>
    %44 = vector.broadcast %43 : vector<16x1xf32> to vector<16x4xf32>
    %45 = arith.select %42, %44, %7 : vector<16x4xi1>, vector<16x4xf32>
    %c0_i32_22 = arith.constant 0 : i32
    %46 = vector.broadcast %c0_i32_22 : i32 to vector<16x4xi32>
    %47 = arith.cmpi eq, %6, %46 : vector<16x4xi32>
    %48 = vector.shape_cast %40 : vector<16x1xf32> to vector<16x1xf32>
    %49 = vector.broadcast %48 : vector<16x1xf32> to vector<16x4xf32>
    %50 = arith.select %47, %49, %8 : vector<16x4xi1>, vector<16x4xf32>
    %51 = vector.extract_strided_slice %0 {offsets = [0, 1], sizes = [16, 1], strides = [1, 1]} : vector<16x5xf32> to vector<16x1xf32>
    %c1 = arith.constant 1 : index
    %c0_23 = arith.constant 0 : index
    %52 = vector.load %arg3[%c1, %c0_23] : memref<4x256xf32, #tpu.memory_space<vmem>>, vector<1x256xf32>
    %53 = vector.broadcast %51 : vector<16x1xf32> to vector<16x256xf32>
    %54 = vector.broadcast %52 : vector<1x256xf32> to vector<16x256xf32>
    %55 = arith.mulf %53, %54 : vector<16x256xf32>
    %c1_24 = arith.constant 1 : index
    %c0_25 = arith.constant 0 : index
    %56 = vector.load %arg4[%c1_24, %c0_25] : memref<4x256xf32, #tpu.memory_space<vmem>>, vector<1x256xf32>
    %57 = vector.broadcast %1 : vector<16x1xf32> to vector<16x256xf32>
    %58 = vector.broadcast %56 : vector<1x256xf32> to vector<16x256xf32>
    %59 = arith.mulf %57, %58 : vector<16x256xf32>
    %60 = arith.addf %55, %59 : vector<16x256xf32>
    %c1_26 = arith.constant 1 : index
    %c0_27 = arith.constant 0 : index
    %61 = vector.load %arg5[%c1_26, %c0_27] : memref<4x256xf32, #tpu.memory_space<vmem>>, vector<1x256xf32>
    %62 = vector.broadcast %61 : vector<1x256xf32> to vector<16x256xf32>
    %63 = arith.addf %60, %62 : vector<16x256xf32>
    %cst_28 = arith.constant 0.000000e+00 : f32
    %64 = vector.broadcast %cst_28 : f32 to vector<16x256xf32>
    %65 = arith.maximumf %63, %64 : vector<16x256xf32>
    %c1_29 = arith.constant 1 : index
    %c0_30 = arith.constant 0 : index
    %c0_31 = arith.constant 0 : index
    %66 = vector.load %arg6[%c1_29, %c0_30, %c0_31] : memref<4x256x128xf32, #tpu.memory_space<vmem>>, vector<1x256x128xf32>
    %67 = vector.shape_cast %66 : vector<1x256x128xf32> to vector<256x128xf32>
    %cst_32 = arith.constant dense<0.000000e+00> : vector<16x128xf32>
    %68 = tpu.matmul %65, %67, %cst_32 {dimension_numbers = #tpu.dot_dimension_numbers<[1], [0], [0], [1], [0, 0, 1, 1], [], []>} : vector<16x256xf32>, vector<256x128xf32>, vector<16x128xf32> -> vector<16x128xf32>
    %c1_33 = arith.constant 1 : index
    %c0_34 = arith.constant 0 : index
    %69 = vector.load %arg7[%c1_33, %c0_34] : memref<4x128xf32, #tpu.memory_space<vmem>>, vector<1x128xf32>
    %70 = vector.broadcast %69 : vector<1x128xf32> to vector<16x128xf32>
    %71 = arith.addf %68, %70 : vector<16x128xf32>
    %cst_35 = arith.constant 0.000000e+00 : f32
    %72 = vector.broadcast %cst_35 : f32 to vector<16x128xf32>
    %73 = arith.maximumf %71, %72 : vector<16x128xf32>
    %c1_36 = arith.constant 1 : index
    %c0_37 = arith.constant 0 : index
    %74 = vector.load %arg8[%c1_36, %c0_37] : memref<4x128xf32, #tpu.memory_space<vmem>>, vector<1x128xf32>
    %75 = vector.broadcast %74 : vector<1x128xf32> to vector<16x128xf32>
    %76 = arith.mulf %73, %75 : vector<16x128xf32>
    %77 = vector.extract_strided_slice %76 {offsets = [0, 0], sizes = [16, 64], strides = [1, 1]} : vector<16x128xf32> to vector<16x64xf32>
    %cst_38 = arith.constant dense<0.000000e+00> : vector<16xf32>
    %78 = vector.multi_reduction <add>, %77, %cst_38 [1] : vector<16x64xf32> to vector<16xf32>
    %79 = vector.shape_cast %78 : vector<16xf32> to vector<16x1xf32>
    %80 = vector.extract_strided_slice %76 {offsets = [0, 64], sizes = [16, 64], strides = [1, 1]} : vector<16x128xf32> to vector<16x64xf32>
    %cst_39 = arith.constant dense<0.000000e+00> : vector<16xf32>
    %81 = vector.multi_reduction <add>, %80, %cst_39 [1] : vector<16x64xf32> to vector<16xf32>
    %82 = vector.shape_cast %81 : vector<16xf32> to vector<16x1xf32>
    %c1_i32 = arith.constant 1 : i32
    %83 = vector.broadcast %c1_i32 : i32 to vector<16x4xi32>
    %84 = arith.cmpi eq, %6, %83 : vector<16x4xi32>
    %85 = vector.shape_cast %79 : vector<16x1xf32> to vector<16x1xf32>
    %86 = vector.broadcast %85 : vector<16x1xf32> to vector<16x4xf32>
    %87 = arith.select %84, %86, %45 : vector<16x4xi1>, vector<16x4xf32>
    %c1_i32_40 = arith.constant 1 : i32
    %88 = vector.broadcast %c1_i32_40 : i32 to vector<16x4xi32>
    %89 = arith.cmpi eq, %6, %88 : vector<16x4xi32>
    %90 = vector.shape_cast %82 : vector<16x1xf32> to vector<16x1xf32>
    %91 = vector.broadcast %90 : vector<16x1xf32> to vector<16x4xf32>
    %92 = arith.select %89, %91, %50 : vector<16x4xi1>, vector<16x4xf32>
    %93 = vector.extract_strided_slice %0 {offsets = [0, 2], sizes = [16, 1], strides = [1, 1]} : vector<16x5xf32> to vector<16x1xf32>
    %c2 = arith.constant 2 : index
    %c0_41 = arith.constant 0 : index
    %94 = vector.load %arg3[%c2, %c0_41] : memref<4x256xf32, #tpu.memory_space<vmem>>, vector<1x256xf32>
    %95 = vector.broadcast %93 : vector<16x1xf32> to vector<16x256xf32>
    %96 = vector.broadcast %94 : vector<1x256xf32> to vector<16x256xf32>
    %97 = arith.mulf %95, %96 : vector<16x256xf32>
    %c2_42 = arith.constant 2 : index
    %c0_43 = arith.constant 0 : index
    %98 = vector.load %arg4[%c2_42, %c0_43] : memref<4x256xf32, #tpu.memory_space<vmem>>, vector<1x256xf32>
    %99 = vector.broadcast %1 : vector<16x1xf32> to vector<16x256xf32>
    %100 = vector.broadcast %98 : vector<1x256xf32> to vector<16x256xf32>
    %101 = arith.mulf %99, %100 : vector<16x256xf32>
    %102 = arith.addf %97, %101 : vector<16x256xf32>
    %c2_44 = arith.constant 2 : index
    %c0_45 = arith.constant 0 : index
    %103 = vector.load %arg5[%c2_44, %c0_45] : memref<4x256xf32, #tpu.memory_space<vmem>>, vector<1x256xf32>
    %104 = vector.broadcast %103 : vector<1x256xf32> to vector<16x256xf32>
    %105 = arith.addf %102, %104 : vector<16x256xf32>
    %cst_46 = arith.constant 0.000000e+00 : f32
    %106 = vector.broadcast %cst_46 : f32 to vector<16x256xf32>
    %107 = arith.maximumf %105, %106 : vector<16x256xf32>
    %c2_47 = arith.constant 2 : index
    %c0_48 = arith.constant 0 : index
    %c0_49 = arith.constant 0 : index
    %108 = vector.load %arg6[%c2_47, %c0_48, %c0_49] : memref<4x256x128xf32, #tpu.memory_space<vmem>>, vector<1x256x128xf32>
    %109 = vector.shape_cast %108 : vector<1x256x128xf32> to vector<256x128xf32>
    %cst_50 = arith.constant dense<0.000000e+00> : vector<16x128xf32>
    %110 = tpu.matmul %107, %109, %cst_50 {dimension_numbers = #tpu.dot_dimension_numbers<[1], [0], [0], [1], [0, 0, 1, 1], [], []>} : vector<16x256xf32>, vector<256x128xf32>, vector<16x128xf32> -> vector<16x128xf32>
    %c2_51 = arith.constant 2 : index
    %c0_52 = arith.constant 0 : index
    %111 = vector.load %arg7[%c2_51, %c0_52] : memref<4x128xf32, #tpu.memory_space<vmem>>, vector<1x128xf32>
    %112 = vector.broadcast %111 : vector<1x128xf32> to vector<16x128xf32>
    %113 = arith.addf %110, %112 : vector<16x128xf32>
    %cst_53 = arith.constant 0.000000e+00 : f32
    %114 = vector.broadcast %cst_53 : f32 to vector<16x128xf32>
    %115 = arith.maximumf %113, %114 : vector<16x128xf32>
    %c2_54 = arith.constant 2 : index
    %c0_55 = arith.constant 0 : index
    %116 = vector.load %arg8[%c2_54, %c0_55] : memref<4x128xf32, #tpu.memory_space<vmem>>, vector<1x128xf32>
    %117 = vector.broadcast %116 : vector<1x128xf32> to vector<16x128xf32>
    %118 = arith.mulf %115, %117 : vector<16x128xf32>
    %119 = vector.extract_strided_slice %118 {offsets = [0, 0], sizes = [16, 64], strides = [1, 1]} : vector<16x128xf32> to vector<16x64xf32>
    %cst_56 = arith.constant dense<0.000000e+00> : vector<16xf32>
    %120 = vector.multi_reduction <add>, %119, %cst_56 [1] : vector<16x64xf32> to vector<16xf32>
    %121 = vector.shape_cast %120 : vector<16xf32> to vector<16x1xf32>
    %122 = vector.extract_strided_slice %118 {offsets = [0, 64], sizes = [16, 64], strides = [1, 1]} : vector<16x128xf32> to vector<16x64xf32>
    %cst_57 = arith.constant dense<0.000000e+00> : vector<16xf32>
    %123 = vector.multi_reduction <add>, %122, %cst_57 [1] : vector<16x64xf32> to vector<16xf32>
    %124 = vector.shape_cast %123 : vector<16xf32> to vector<16x1xf32>
    %c2_i32 = arith.constant 2 : i32
    %125 = vector.broadcast %c2_i32 : i32 to vector<16x4xi32>
    %126 = arith.cmpi eq, %6, %125 : vector<16x4xi32>
    %127 = vector.shape_cast %121 : vector<16x1xf32> to vector<16x1xf32>
    %128 = vector.broadcast %127 : vector<16x1xf32> to vector<16x4xf32>
    %129 = arith.select %126, %128, %87 : vector<16x4xi1>, vector<16x4xf32>
    %c2_i32_58 = arith.constant 2 : i32
    %130 = vector.broadcast %c2_i32_58 : i32 to vector<16x4xi32>
    %131 = arith.cmpi eq, %6, %130 : vector<16x4xi32>
    %132 = vector.shape_cast %124 : vector<16x1xf32> to vector<16x1xf32>
    %133 = vector.broadcast %132 : vector<16x1xf32> to vector<16x4xf32>
    %134 = arith.select %131, %133, %92 : vector<16x4xi1>, vector<16x4xf32>
    %135 = vector.extract_strided_slice %0 {offsets = [0, 3], sizes = [16, 1], strides = [1, 1]} : vector<16x5xf32> to vector<16x1xf32>
    %c3 = arith.constant 3 : index
    %c0_59 = arith.constant 0 : index
    %136 = vector.load %arg3[%c3, %c0_59] : memref<4x256xf32, #tpu.memory_space<vmem>>, vector<1x256xf32>
    %137 = vector.broadcast %135 : vector<16x1xf32> to vector<16x256xf32>
    %138 = vector.broadcast %136 : vector<1x256xf32> to vector<16x256xf32>
    %139 = arith.mulf %137, %138 : vector<16x256xf32>
    %c3_60 = arith.constant 3 : index
    %c0_61 = arith.constant 0 : index
    %140 = vector.load %arg4[%c3_60, %c0_61] : memref<4x256xf32, #tpu.memory_space<vmem>>, vector<1x256xf32>
    %141 = vector.broadcast %1 : vector<16x1xf32> to vector<16x256xf32>
    %142 = vector.broadcast %140 : vector<1x256xf32> to vector<16x256xf32>
    %143 = arith.mulf %141, %142 : vector<16x256xf32>
    %144 = arith.addf %139, %143 : vector<16x256xf32>
    %c3_62 = arith.constant 3 : index
    %c0_63 = arith.constant 0 : index
    %145 = vector.load %arg5[%c3_62, %c0_63] : memref<4x256xf32, #tpu.memory_space<vmem>>, vector<1x256xf32>
    %146 = vector.broadcast %145 : vector<1x256xf32> to vector<16x256xf32>
    %147 = arith.addf %144, %146 : vector<16x256xf32>
    %cst_64 = arith.constant 0.000000e+00 : f32
    %148 = vector.broadcast %cst_64 : f32 to vector<16x256xf32>
    %149 = arith.maximumf %147, %148 : vector<16x256xf32>
    %c3_65 = arith.constant 3 : index
    %c0_66 = arith.constant 0 : index
    %c0_67 = arith.constant 0 : index
    %150 = vector.load %arg6[%c3_65, %c0_66, %c0_67] : memref<4x256x128xf32, #tpu.memory_space<vmem>>, vector<1x256x128xf32>
    %151 = vector.shape_cast %150 : vector<1x256x128xf32> to vector<256x128xf32>
    %cst_68 = arith.constant dense<0.000000e+00> : vector<16x128xf32>
    %152 = tpu.matmul %149, %151, %cst_68 {dimension_numbers = #tpu.dot_dimension_numbers<[1], [0], [0], [1], [0, 0, 1, 1], [], []>} : vector<16x256xf32>, vector<256x128xf32>, vector<16x128xf32> -> vector<16x128xf32>
    %c3_69 = arith.constant 3 : index
    %c0_70 = arith.constant 0 : index
    %153 = vector.load %arg7[%c3_69, %c0_70] : memref<4x128xf32, #tpu.memory_space<vmem>>, vector<1x128xf32>
    %154 = vector.broadcast %153 : vector<1x128xf32> to vector<16x128xf32>
    %155 = arith.addf %152, %154 : vector<16x128xf32>
    %cst_71 = arith.constant 0.000000e+00 : f32
    %156 = vector.broadcast %cst_71 : f32 to vector<16x128xf32>
    %157 = arith.maximumf %155, %156 : vector<16x128xf32>
    %c3_72 = arith.constant 3 : index
    %c0_73 = arith.constant 0 : index
    %158 = vector.load %arg8[%c3_72, %c0_73] : memref<4x128xf32, #tpu.memory_space<vmem>>, vector<1x128xf32>
    %159 = vector.broadcast %158 : vector<1x128xf32> to vector<16x128xf32>
    %160 = arith.mulf %157, %159 : vector<16x128xf32>
    %161 = vector.extract_strided_slice %160 {offsets = [0, 0], sizes = [16, 64], strides = [1, 1]} : vector<16x128xf32> to vector<16x64xf32>
    %cst_74 = arith.constant dense<0.000000e+00> : vector<16xf32>
    %162 = vector.multi_reduction <add>, %161, %cst_74 [1] : vector<16x64xf32> to vector<16xf32>
    %163 = vector.shape_cast %162 : vector<16xf32> to vector<16x1xf32>
    %164 = vector.extract_strided_slice %160 {offsets = [0, 64], sizes = [16, 64], strides = [1, 1]} : vector<16x128xf32> to vector<16x64xf32>
    %cst_75 = arith.constant dense<0.000000e+00> : vector<16xf32>
    %165 = vector.multi_reduction <add>, %164, %cst_75 [1] : vector<16x64xf32> to vector<16xf32>
    %166 = vector.shape_cast %165 : vector<16xf32> to vector<16x1xf32>
    %c3_i32 = arith.constant 3 : i32
    %167 = vector.broadcast %c3_i32 : i32 to vector<16x4xi32>
    %168 = arith.cmpi eq, %6, %167 : vector<16x4xi32>
    %169 = vector.shape_cast %163 : vector<16x1xf32> to vector<16x1xf32>
    %170 = vector.broadcast %169 : vector<16x1xf32> to vector<16x4xf32>
    %171 = arith.select %168, %170, %129 : vector<16x4xi1>, vector<16x4xf32>
    %c3_i32_76 = arith.constant 3 : i32
    %172 = vector.broadcast %c3_i32_76 : i32 to vector<16x4xi32>
    %173 = arith.cmpi eq, %6, %172 : vector<16x4xi32>
    %174 = vector.shape_cast %166 : vector<16x1xf32> to vector<16x1xf32>
    %175 = vector.broadcast %174 : vector<16x1xf32> to vector<16x4xf32>
    %176 = arith.select %173, %175, %134 : vector<16x4xi1>, vector<16x4xf32>
    %c0_77 = arith.constant 0 : index
    %c0_78 = arith.constant 0 : index
    %177 = vector.load %arg9[%c0_77, %c0_78] : memref<16x4xf32, #tpu.memory_space<vmem>>, vector<16x4xf32>
    tpu.vector_store %arg9[%c0_77, %c0_78], %5 {strides = array<i32>} : memref<16x4xf32, #tpu.memory_space<vmem>>, vector<16x4xf32>,
    %c0_79 = arith.constant 0 : index
    %c0_80 = arith.constant 0 : index
    %178 = vector.load %arg10[%c0_79, %c0_80] : memref<16x4xf32, #tpu.memory_space<vmem>>, vector<16x4xf32>
    tpu.vector_store %arg10[%c0_79, %c0_80], %171 {strides = array<i32>} : memref<16x4xf32, #tpu.memory_space<vmem>>, vector<16x4xf32>,
    %c0_81 = arith.constant 0 : index
    %c0_82 = arith.constant 0 : index
    %179 = vector.load %arg11[%c0_81, %c0_82] : memref<16x4xf32, #tpu.memory_space<vmem>>, vector<16x4xf32>
    tpu.vector_store %arg11[%c0_81, %c0_82], %176 {strides = array<i32>} : memref<16x4xf32, #tpu.memory_space<vmem>>, vector<16x4xf32>,
    %180 = arith.addf %5, %171 : vector<16x4xf32>
    %181 = arith.addf %180, %176 : vector<16x4xf32>
    %cst_83 = arith.constant dense<0.000000e+00> : vector<16xf32>
    %182 = vector.multi_reduction <add>, %181, %cst_83 [1] : vector<16x4xf32> to vector<16xf32>
    %183 = vector.shape_cast %182 : vector<16xf32> to vector<16x1xf32>
    %c0_84 = arith.constant 0 : index
    %c0_85 = arith.constant 0 : index
    %184 = vector.load %arg12[%c0_84, %c0_85] : memref<16x1xf32, #tpu.memory_space<vmem>>, vector<16x1xf32>
    tpu.vector_store %arg12[%c0_84, %c0_85], %183 {strides = array<i32>} : memref<16x1xf32, #tpu.memory_space<vmem>>, vector<16x1xf32>,
    return
  }
  func.func @transform_0(%arg0: i32) -> (i32, i32) {
    %c0_i32 = arith.constant 0 : i32
    %c0_i32_0 = arith.constant 0 : i32
    return %arg0, %c0_i32 : i32, i32
  }
  func.func @transform_1(%arg0: i32) -> (i32, i32) {
    %c0_i32 = arith.constant 0 : i32
    %c0_i32_0 = arith.constant 0 : i32
    %c0_i32_1 = arith.constant 0 : i32
    return %c0_i32, %c0_i32_0 : i32, i32
  }
  func.func @transform_2(%arg0: i32) -> (i32, i32) {
    %c0_i32 = arith.constant 0 : i32
    %c0_i32_0 = arith.constant 0 : i32
    %c0_i32_1 = arith.constant 0 : i32
    return %c0_i32, %c0_i32_0 : i32, i32
  }
  func.func @transform_3(%arg0: i32) -> (i32, i32) {
    %c0_i32 = arith.constant 0 : i32
    %c0_i32_0 = arith.constant 0 : i32
    %c0_i32_1 = arith.constant 0 : i32
    return %c0_i32, %c0_i32_0 : i32, i32
  }
  func.func @transform_4(%arg0: i32) -> (i32, i32) {
    %c0_i32 = arith.constant 0 : i32
    %c0_i32_0 = arith.constant 0 : i32
    %c0_i32_1 = arith.constant 0 : i32
    return %c0_i32, %c0_i32_0 : i32, i32
  }
  func.func @transform_5(%arg0: i32) -> (i32, i32, i32) {
    %c0_i32 = arith.constant 0 : i32
    %c0_i32_0 = arith.constant 0 : i32
    %c0_i32_1 = arith.constant 0 : i32
    %c0_i32_2 = arith.constant 0 : i32
    return %c0_i32, %c0_i32_0, %c0_i32_1 : i32, i32, i32
  }
  func.func @transform_6(%arg0: i32) -> (i32, i32) {
    %c0_i32 = arith.constant 0 : i32
    %c0_i32_0 = arith.constant 0 : i32
    %c0_i32_1 = arith.constant 0 : i32
    return %c0_i32, %c0_i32_0 : i32, i32
  }
  func.func @transform_7(%arg0: i32) -> (i32, i32) {
    %c0_i32 = arith.constant 0 : i32
    %c0_i32_0 = arith.constant 0 : i32
    %c0_i32_1 = arith.constant 0 : i32
    return %c0_i32, %c0_i32_0 : i32, i32
  }
  func.func @transform_8(%arg0: i32) -> (i32, i32) {
    %c0_i32 = arith.constant 0 : i32
    %c0_i32_0 = arith.constant 0 : i32
    return %arg0, %c0_i32 : i32, i32
  }
  func.func @transform_9(%arg0: i32) -> (i32, i32) {
    %c0_i32 = arith.constant 0 : i32
    %c0_i32_0 = arith.constant 0 : i32
    return %arg0, %c0_i32 : i32, i32
  }
  func.func @transform_10(%arg0: i32) -> (i32, i32) {
    %c0_i32 = arith.constant 0 : i32
    %c0_i32_0 = arith.constant 0 : i32
    return %arg0, %c0_i32 : i32, i32
  }
  func.func @transform_11(%arg0: i32) -> (i32, i32) {
    %c0_i32 = arith.constant 0 : i32
    %c0_i32_0 = arith.constant 0 : i32
    return %arg0, %c0_i32 : i32, i32
  }
}

</mosaic_0001>

<llo_original>
// kernel: survival_forward.1
$region0: #{survival_forward.1}
  #allocation0 [shape = 'u32[]', space=smem, size = 0x4, offset = 0x4, fixed_abs, tag = 'smem constant byte address 0x4 - core index']
  #allocation1 [shape = 'u32[144,128]{1,0:T(1,128)}', space=vmem, size = 0x12000, scoped, tag = 'internal scratch']
  %s0 = inlined_call_operand.vmem [shape: f32[16,5], index: 0, kind: input, shape index: {}]
  %s1 = inlined_call_operand.vmem [shape: f32[1,4], index: 1, kind: input, shape index: {}]
  %s2 = inlined_call_operand.vmem [shape: f32[4,256], index: 2, kind: input, shape index: {}]
  %s3 = inlined_call_operand.vmem [shape: f32[4,256], index: 3, kind: input, shape index: {}]
  %s4 = inlined_call_operand.vmem [shape: f32[4,256], index: 4, kind: input, shape index: {}]
  %s5 = inlined_call_operand.hbm [shape: f32[4,256,128], index: 5, kind: input, shape index: {}]
  %s6 = inlined_call_operand.vmem [shape: f32[4,128], index: 6, kind: input, shape index: {}]
  %s7 = inlined_call_operand.vmem [shape: f32[4,128], index: 7, kind: input, shape index: {}]
  %s8 = inlined_call_operand.vmem [shape: f32[16,4], index: 8, kind: output, shape index: {0}]
  %s9 = inlined_call_operand.vmem [shape: f32[16,4], index: 9, kind: output, shape index: {1}]
  %s10 = inlined_call_operand.vmem [shape: f32[16,4], index: 10, kind: output, shape index: {2}]
  %s11 = inlined_call_operand.vmem [shape: f32[16,1], index: 11, kind: output, shape index: {3}]
  %12 = xla_tuple %s8, %s9, %s10, %s11
  %s13 = sld [smem:[#allocation0]]
  $region70: #{survival_forward.1} parent=0
    _
  %s15 = ssub.s32 1, %s13
  %s16 = scalar_select 0, %s15, %s13
  $region1: #{survival_forward.1} parent=0
    #allocation2 [shape = 'u8[524288]{0}', space=vmem, size = 0x80000, scoped, tag = 'input window, operand 5, single buffered']
    #allocation3 [shape = 's32[1]{0}', space=sflag, size = 0x4, scoped, tag = 'scoped memory for survival_forward.1']
    %17 = vsyncpa [#allocation3], 0
    // Predicated region
    $region2: #{survival_forward.1} parent=1 // pred_check
      _
    $region3: #{survival_forward.1} parent=1 // pred_check_branch
      %19 = sbr.rel (0) target = $region5
    $region4: #{survival_forward.1} parent=1 // pred_region
      _
    $region5: #{survival_forward.1} parent=1 // pred_fallthru
      _
    // Predicated region
    $region6: #{survival_forward.1} parent=1 // pred_check
      _
    $region7: #{survival_forward.1} parent=1 // pred_check_branch
      %21 = sbr.rel (0) target = $region9
    $region8: #{survival_forward.1} parent=1 // pred_region
      _
    $region9: #{survival_forward.1} parent=1 // pred_fallthru
      _
    // Predicated region
    $region10: #{survival_forward.1} parent=1 // pred_check
      _
    $region11: #{survival_forward.1} parent=1 // pred_check_branch
      %23 = sbr.rel (0) target = $region13
    $region12: #{survival_forward.1} parent=1 // pred_region
      _
    $region13: #{survival_forward.1} parent=1 // pred_fallthru
      _
    // Predicated region
    $region14: #{survival_forward.1} parent=1 // pred_check
      _
    $region15: #{survival_forward.1} parent=1 // pred_check_branch
      %25 = sbr.rel (0) target = $region17
    $region16: #{survival_forward.1} parent=1 // pred_region
      _
    $region17: #{survival_forward.1} parent=1 // pred_fallthru
      _
    // Predicated region
    $region18: #{survival_forward.1} parent=1 // pred_check
      _
    $region19: #{survival_forward.1} parent=1 // pred_check_branch
      %27 = sbr.rel (0) target = $region21
    $region20: #{survival_forward.1} parent=1 // pred_region
      _
    $region21: #{survival_forward.1} parent=1 // pred_fallthru
      _
    // Predicated region
    $region22: #{survival_forward.1} parent=1 // pred_check
      _
    $region23: #{survival_forward.1} parent=1 // pred_check_branch
      %29 = sbr.rel (0) target = $region25
    $region24: #{survival_forward.1} parent=1 // pred_region
      %s31 = ssub.s32 16384, 16384
      %32 = vsyncadd [#allocation3], %s31
      %s33 = sshll.u32 [#allocation2], 4
      %s34 = int_to_ptr.vmem [resolvable:$true] %s33
      %39 = dma.hbm_to_vmem [thread:$0]  %s5, 16384, %s34, [#allocation3], 128, 128, 8
    $region25: #{survival_forward.1} parent=1 // pred_fallthru
      _
    // Predicated region
    $region26: #{survival_forward.1} parent=1 // pred_check
      _
    $region27: #{survival_forward.1} parent=1 // pred_check_branch
      %41 = sbr.rel (0) target = $region29
    $region28: #{survival_forward.1} parent=1 // pred_region
      _
    $region29: #{survival_forward.1} parent=1 // pred_fallthru
      _
    // Predicated region
    $region30: #{survival_forward.1} parent=1 // pred_check
      _
    $region31: #{survival_forward.1} parent=1 // pred_check_branch
      %43 = sbr.rel (0) target = $region33
    $region32: #{survival_forward.1} parent=1 // pred_region
      _
    $region33: #{survival_forward.1} parent=1 // pred_fallthru
      _
    // Predicated region
    $region34: #{survival_forward.1} parent=1 // pred_check
      _
    $region35: #{survival_forward.1} parent=1 // pred_check_branch
      %45 = sbr.rel (0) target = $region37
    $region36: #{survival_forward.1} parent=1 // pred_region
      %46 = dma.done [#allocation3], 16384
    $region37: #{survival_forward.1} parent=1 // pred_fallthru
      _
    %v47 = vld [vmem:[%s0] sm:$0xff]
    %v48 = vld [vmem:[%s0 + $0x8] sm:$0xff]
    %v49 = vld [vmem:[%s1] sm:$0x1]
    %v51 = vlaneseq
    %v52 = vshrl.u32 %v51, 7
    %v53 = vsub.s32 0, %v52
    %v54 = vrot.slane %v49, %v53
    %v56 = vmul.f32 %v47, %v54
    %v57 = vmul.f32 %v48, %v54
    %v58 = vlaneseq
    %v59 = vand.u32 %v58, 127
    %v60 = vld [vmem:[%s2] ss:$4 sm:$0x3]
    %62 = vset.pattern.permute.xlu0 0
    %63 = vperm.xlu0 %62, %v47
    %v64 = vpop.permute.xlu0 %63
    %67 = vset.pattern.permute.xlu0 0
    %68 = vperm.xlu0 %67, %v48
    %v69 = vpop.permute.xlu0 %68
    %v72 = vlaneseq
    %v73 = vshrl.u32 %v72, 7
    %v74 = vsub.s32 0, %v73
    %v75 = vrot.slane %v60, %v74
    %v76 = vlaneseq
    %v77 = vshrl.u32 %v76, 7
    %v78 = vsub.s32 1, %v77
    %v79 = vrot.slane %v60, %v78
    %v82 = vmul.f32 %v64, %v75
    %v83 = vmul.f32 %v64, %v79
    %v84 = vmul.f32 %v69, %v75
    %v85 = vmul.f32 %v69, %v79
    %v86 = vld [vmem:[%s3] ss:$4 sm:$0x3]
    %87 = vset.pattern.permute.xlu0 4
    %88 = vperm.xlu0 %87, %v47
    %v89 = vpop.permute.xlu0 %88
    %91 = vset.pattern.permute.xlu0 4
    %92 = vperm.xlu0 %91, %v48
    %v93 = vpop.permute.xlu0 %92
    %v96 = vlaneseq
    %v97 = vshrl.u32 %v96, 7
    %v98 = vsub.s32 0, %v97
    %v99 = vrot.slane %v86, %v98
    %v100 = vlaneseq
    %v101 = vshrl.u32 %v100, 7
    %v102 = vsub.s32 1, %v101
    %v103 = vrot.slane %v86, %v102
    %v106 = vmul.f32 %v89, %v99
    %v107 = vmul.f32 %v89, %v103
    %v108 = vmul.f32 %v93, %v99
    %v109 = vmul.f32 %v93, %v103
    %v110 = vadd.f32 %v82, %v106
    %v111 = vadd.f32 %v83, %v107
    %v112 = vadd.f32 %v84, %v108
    %v113 = vadd.f32 %v85, %v109
    %v114 = vld [vmem:[%s4] ss:$4 sm:$0x3]
    %v116 = vlaneseq
    %v117 = vshrl.u32 %v116, 7
    %v118 = vsub.s32 0, %v117
    %v119 = vrot.slane %v114, %v118
    %v120 = vlaneseq
    %v121 = vshrl.u32 %v120, 7
    %v122 = vsub.s32 1, %v121
    %v123 = vrot.slane %v114, %v122
    %v126 = vadd.f32 %v110, %v119
    %v127 = vadd.f32 %v111, %v123
    %v128 = vadd.f32 %v112, %v119
    %v129 = vadd.f32 %v113, %v123
    %v130 = vmax.f32 %v126, 0.0
    %v131 = vmax.f32 %v127, 0.0
    %v132 = vmax.f32 %v128, 0.0
    %v133 = vmax.f32 %v129, 0.0
    %v134 = vld [vmem:[#allocation2] sm:$0xff]
    %v135 = vld [vmem:[#allocation2 + $0x8] sm:$0xff]
    %v136 = vld [vmem:[#allocation2 + $0x10] sm:$0xff]
    %v137 = vld [vmem:[#allocation2 + $0x18] sm:$0xff]
    %v138 = vld [vmem:[#allocation2 + $0x20] sm:$0xff]
    %v139 = vld [vmem:[#allocation2 + $0x28] sm:$0xff]
    %v140 = vld [vmem:[#allocation2 + $0x30] sm:$0xff]
    %v141 = vld [vmem:[#allocation2 + $0x38] sm:$0xff]
    %v142 = vld [vmem:[#allocation2 + $0x40] sm:$0xff]
    %v143 = vld [vmem:[#allocation2 + $0x48] sm:$0xff]
    %v144 = vld [vmem:[#allocation2 + $0x50] sm:$0xff]
    %v145 = vld [vmem:[#allocation2 + $0x58] sm:$0xff]
    %v146 = vld [vmem:[#allocation2 + $0x60] sm:$0xff]
    %v147 = vld [vmem:[#allocation2 + $0x68] sm:$0xff]
    %v148 = vld [vmem:[#allocation2 + $0x70] sm:$0xff]
    %v149 = vld [vmem:[#allocation2 + $0x78] sm:$0xff]
    %v150 = vld [vmem:[#allocation2 + $0x80] sm:$0xff]
    %v151 = vld [vmem:[#allocation2 + $0x88] sm:$0xff]
    %v152 = vld [vmem:[#allocation2 + $0x90] sm:$0xff]
    %v153 = vld [vmem:[#allocation2 + $0x98] sm:$0xff]
    %v154 = vld [vmem:[#allocation2 + $0xa0] sm:$0xff]
    %v155 = vld [vmem:[#allocation2 + $0xa8] sm:$0xff]
    %v156 = vld [vmem:[#allocation2 + $0xb0] sm:$0xff]
    %v157 = vld [vmem:[#allocation2 + $0xb8] sm:$0xff]
    %v158 = vld [vmem:[#allocation2 + $0xc0] sm:$0xff]
    %v159 = vld [vmem:[#allocation2 + $0xc8] sm:$0xff]
    %v160 = vld [vmem:[#allocation2 + $0xd0] sm:$0xff]
    %v161 = vld [vmem:[#allocation2 + $0xd8] sm:$0xff]
    %v162 = vld [vmem:[#allocation2 + $0xe0] sm:$0xff]
    %v163 = vld [vmem:[#allocation2 + $0xe8] sm:$0xff]
    %v164 = vld [vmem:[#allocation2 + $0xf0] sm:$0xff]
    %v165 = vld [vmem:[#allocation2 + $0xf8] sm:$0xff]
    %v166 = vld [vmem:[%s6] sm:$0x1]
    %v167 = vlaneseq
    %v168 = vshrl.u32 %v167, 7
    %v169 = vsub.s32 0, %v168
    %v170 = vrot.slane %v166, %v169
    %171 = vmatprep.subr.mxu0 0.0
    %172 = vmatpush1.msra.mxu0 %v134
    %173 = vmatprep.subr.mxu0 0.0
    %174 = vmatpush1.msra.mxu0 %v135
    %175 = vmatprep.subr.mxu0 0.0
    %176 = vmatpush1.msra.mxu0 %v136
    %177 = vmatprep.subr.mxu0 0.0
    %178 = vmatpush1.msra.mxu0 %v137
    %179 = vmatprep.subr.mxu0 0.0
    %180 = vmatpush1.msra.mxu0 %v138
    %181 = vmatprep.subr.mxu0 0.0
    %182 = vmatpush1.msra.mxu0 %v139
    %183 = vmatprep.subr.mxu0 0.0
    %184 = vmatpush1.msra.mxu0 %v140
    %185 = vmatprep.subr.mxu0 0.0
    %186 = vmatpush1.msra.mxu0 %v141
    %187 = vmatprep.subr.mxu0 0.0
    %188 = vmatpush1.msra.mxu0 %v142
    %189 = vmatprep.subr.mxu0 0.0
    %190 = vmatpush1.msra.mxu0 %v143
    %191 = vmatprep.subr.mxu0 0.0
    %192 = vmatpush1.msra.mxu0 %v144
    %193 = vmatprep.subr.mxu0 0.0
    %194 = vmatpush1.msra.mxu0 %v145
    %195 = vmatprep.subr.mxu0 0.0
    %196 = vmatpush1.msra.mxu0 %v146
    %197 = vmatprep.subr.mxu0 0.0
    %198 = vmatpush1.msra.mxu0 %v147
    %199 = vmatprep.subr.mxu0 0.0
    %200 = vmatpush1.msra.mxu0 %v148
    %201 = vmatprep.subr.mxu0 0.0
    %202 = vmatpush1.msra.mxu0 %v149
    %203 = vmatprep.subr.mxu0 0.0
    %204 = vmatpush1.msra.mxu0 %v150
    %205 = vmatprep.subr.mxu0 0.0
    %206 = vmatpush1.msra.mxu0 %v151
    %207 = vmatprep.subr.mxu0 0.0
    %208 = vmatpush1.msra.mxu0 %v152
    %209 = vmatprep.subr.mxu0 0.0
    %210 = vmatpush1.msra.mxu0 %v153
    %211 = vmatprep.subr.mxu0 0.0
    %212 = vmatpush1.msra.mxu0 %v154
    %213 = vmatprep.subr.mxu0 0.0
    %214 = vmatpush1.msra.mxu0 %v155
    %215 = vmatprep.subr.mxu0 0.0
    %216 = vmatpush1.msra.mxu0 %v156
    %217 = vmatprep.subr.mxu0 0.0
    %218 = vmatpush1.msra.mxu0 %v157
    %219 = vmatprep.subr.mxu0 0.0
    %220 = vmatpush1.msra.mxu0 %v158
    %221 = vmatprep.subr.mxu0 0.0
    %222 = vmatpush1.msra.mxu0 %v159
    %223 = vmatprep.subr.mxu0 0.0
    %224 = vmatpush1.msra.mxu0 %v160
    %225 = vmatprep.subr.mxu0 0.0
    %226 = vmatpush1.msra.mxu0 %v161
    %227 = vmatprep.subr.mxu0 0.0
    %228 = vmatpush1.msra.mxu0 %v162
    %229 = vmatprep.subr.mxu0 0.0
    %230 = vmatpush1.msra.mxu0 %v163
    %231 = vmatprep.subr.mxu0 0.0
    %232 = vmatpush1.msra.mxu0 %v164
    %233 = vmatprep.subr.mxu0 0.0
    %234 = vmatpush1.msra.mxu0 %v165
    %235 = vmatprep.mubr.f32.mxu0 %v131
    %236 = vmatmul.mubr.f32.gmra.mrb[0].mxu0 %v130
    %v237 = vpop.f32.mrb[0].mxu0
    %v238 = vadd.f32 %v170, %v237
    %v239 = vpop.f32.mrb[0].mxu0
    %240 = vmatprep.mubr.f32.mxu0 %v133
    %241 = vmatmul.mubr.f32.gmra.mrb[0].mxu0 %v132
    %v242 = vpop.f32.mrb[0].mxu0
    %v243 = vadd.f32 %v170, %v242
    %v244 = vpop.f32.mrb[0].mxu0
    %245 = vdwg.mxu0
    %v246 = vmax.f32 %v238, 0.0
    %v247 = vmax.f32 %v243, 0.0
    %v248 = vld [vmem:[%s7] sm:$0x1]
    %v249 = vlaneseq
    %v250 = vshrl.u32 %v249, 7
    %v251 = vsub.s32 0, %v250
    %v252 = vrot.slane %v248, %v251
    %v253 = vmul.f32 %v246, %v252
    %v254 = vmul.f32 %v247, %v252
    %vm255 = vcmask 523264
    %v256 = vsel %vm255, %v253, 0.0
    %257 = vadd.xlane.f32.xlu0 %v256
    %v258 = vpop.xlane.xlu0 %257
    %v259 = vsel %vm255, %v254, 0.0
    %260 = vadd.xlane.f32.xlu0 %v259
    %v261 = vpop.xlane.xlu0 %260
    %264 = vrot.lane.b32.xlu0 %v253, 64
    %v265 = vpop.permute.xlu0 %264
    %266 = vrot.lane.b32.xlu0 %v254, 64
    %v267 = vpop.permute.xlu0 %266
    %v270 = vsel %vm255, %v265, 0.0
    %271 = vadd.xlane.f32.xlu0 %v270
    %v272 = vpop.xlane.xlu0 %271
    %v273 = vsel %vm255, %v267, 0.0
    %274 = vadd.xlane.f32.xlu0 %v273
    %v275 = vpop.xlane.xlu0 %274
    %vm276 = vcmp.eq.s32.totalorder %v59, 0
    %v277 = vsel %vm276, %v258, 0.0
    %v278 = vsel %vm276, %v261, 0.0
    %v279 = vsel %vm276, %v272, 0.0
    %v280 = vsel %vm276, %v275, 0.0
    %s281 = scalar_lea.vmem %s2, 1
    %v282 = vld [vmem:[%s281] ss:$4 sm:$0x3]
    %283 = vset.pattern.permute.xlu0 1
    %284 = vperm.xlu0 %283, %v47
    %v285 = vpop.permute.xlu0 %284
    %287 = vset.pattern.permute.xlu0 1
    %288 = vperm.xlu0 %287, %v48
    %v289 = vpop.permute.xlu0 %288
    %v292 = vlaneseq
    %v293 = vshrl.u32 %v292, 7
    %v294 = vsub.s32 0, %v293
    %v295 = vrot.slane %v282, %v294
    %v296 = vlaneseq
    %v297 = vshrl.u32 %v296, 7
    %v298 = vsub.s32 1, %v297
    %v299 = vrot.slane %v282, %v298
    %v302 = vmul.f32 %v285, %v295
    %v303 = vmul.f32 %v285, %v299
    %v304 = vmul.f32 %v289, %v295
    %v305 = vmul.f32 %v289, %v299
    %s306 = scalar_lea.vmem %s3, 1
    %v307 = vld [vmem:[%s306] ss:$4 sm:$0x3]
    %v309 = vlaneseq
    %v310 = vshrl.u32 %v309, 7
    %v311 = vsub.s32 0, %v310
    %v312 = vrot.slane %v307, %v311
    %v313 = vlaneseq
    %v314 = vshrl.u32 %v313, 7
    %v315 = vsub.s32 1, %v314
    %v316 = vrot.slane %v307, %v315
    %v319 = vmul.f32 %v89, %v312
    %v320 = vmul.f32 %v89, %v316
    %v321 = vmul.f32 %v93, %v312
    %v322 = vmul.f32 %v93, %v316
    %v323 = vadd.f32 %v302, %v319
    %v324 = vadd.f32 %v303, %v320
    %v325 = vadd.f32 %v304, %v321
    %v326 = vadd.f32 %v305, %v322
    %s327 = scalar_lea.vmem %s4, 1
    %v328 = vld [vmem:[%s327] ss:$4 sm:$0x3]
    %v330 = vlaneseq
    %v331 = vshrl.u32 %v330, 7
    %v332 = vsub.s32 0, %v331
    %v333 = vrot.slane %v328, %v332
    %v334 = vlaneseq
    %v335 = vshrl.u32 %v334, 7
    %v336 = vsub.s32 1, %v335
    %v337 = vrot.slane %v328, %v336
    %v340 = vadd.f32 %v323, %v333
    %v341 = vadd.f32 %v324, %v337
    %v342 = vadd.f32 %v325, %v333
    %v343 = vadd.f32 %v326, %v337
    %v344 = vmax.f32 %v340, 0.0
    %v345 = vmax.f32 %v341, 0.0
    %v346 = vmax.f32 %v342, 0.0
    %v347 = vmax.f32 %v343, 0.0
    %s348 = scalar_lea.vmem [#allocation2], 256
    %v349 = vld [vmem:[%s348] sm:$0xff]
    %v350 = vld [vmem:[%s348 + $0x8] sm:$0xff]
    %v351 = vld [vmem:[%s348 + $0x10] sm:$0xff]
    %v352 = vld [vmem:[%s348 + $0x18] sm:$0xff]
    %v353 = vld [vmem:[%s348 + $0x20] sm:$0xff]
    %v354 = vld [vmem:[%s348 + $0x28] sm:$0xff]
    %v355 = vld [vmem:[%s348 + $0x30] sm:$0xff]
    %v356 = vld [vmem:[%s348 + $0x38] sm:$0xff]
    %v357 = vld [vmem:[%s348 + $0x40] sm:$0xff]
    %v358 = vld [vmem:[%s348 + $0x48] sm:$0xff]
    %v359 = vld [vmem:[%s348 + $0x50] sm:$0xff]
    %v360 = vld [vmem:[%s348 + $0x58] sm:$0xff]
    %v361 = vld [vmem:[%s348 + $0x60] sm:$0xff]
    %v362 = vld [vmem:[%s348 + $0x68] sm:$0xff]
    %v363 = vld [vmem:[%s348 + $0x70] sm:$0xff]
    %v364 = vld [vmem:[%s348 + $0x78] sm:$0xff]
    %v365 = vld [vmem:[%s348 + $0x80] sm:$0xff]
    %v366 = vld [vmem:[%s348 + $0x88] sm:$0xff]
    %v367 = vld [vmem:[%s348 + $0x90] sm:$0xff]
    %v368 = vld [vmem:[%s348 + $0x98] sm:$0xff]
    %v369 = vld [vmem:[%s348 + $0xa0] sm:$0xff]
    %v370 = vld [vmem:[%s348 + $0xa8] sm:$0xff]
    %v371 = vld [vmem:[%s348 + $0xb0] sm:$0xff]
    %v372 = vld [vmem:[%s348 + $0xb8] sm:$0xff]
    %v373 = vld [vmem:[%s348 + $0xc0] sm:$0xff]
    %v374 = vld [vmem:[%s348 + $0xc8] sm:$0xff]
    %v375 = vld [vmem:[%s348 + $0xd0] sm:$0xff]
    %v376 = vld [vmem:[%s348 + $0xd8] sm:$0xff]
    %v377 = vld [vmem:[%s348 + $0xe0] sm:$0xff]
    %v378 = vld [vmem:[%s348 + $0xe8] sm:$0xff]
    %v379 = vld [vmem:[%s348 + $0xf0] sm:$0xff]
    %v380 = vld [vmem:[%s348 + $0xf8] sm:$0xff]
    %v381 = vld [vmem:[%s6 + $0x1] sm:$0x1]
    %v382 = vlaneseq
    %v383 = vshrl.u32 %v382, 7
    %v384 = vsub.s32 0, %v383
    %v385 = vrot.slane %v381, %v384
    %386 = vmatprep.subr.mxu0 0.0
    %387 = vmatpush1.msra.mxu0 %v349
    %388 = vmatprep.subr.mxu0 0.0
    %389 = vmatpush1.msra.mxu0 %v350
    %390 = vmatprep.subr.mxu0 0.0
    %391 = vmatpush1.msra.mxu0 %v351
    %392 = vmatprep.subr.mxu0 0.0
    %393 = vmatpush1.msra.mxu0 %v352
    %394 = vmatprep.subr.mxu0 0.0
    %395 = vmatpush1.msra.mxu0 %v353
    %396 = vmatprep.subr.mxu0 0.0
    %397 = vmatpush1.msra.mxu0 %v354
    %398 = vmatprep.subr.mxu0 0.0
    %399 = vmatpush1.msra.mxu0 %v355
    %400 = vmatprep.subr.mxu0 0.0
    %401 = vmatpush1.msra.mxu0 %v356
    %402 = vmatprep.subr.mxu0 0.0
    %403 = vmatpush1.msra.mxu0 %v357
    %404 = vmatprep.subr.mxu0 0.0
    %405 = vmatpush1.msra.mxu0 %v358
    %406 = vmatprep.subr.mxu0 0.0
    %407 = vmatpush1.msra.mxu0 %v359
    %408 = vmatprep.subr.mxu0 0.0
    %409 = vmatpush1.msra.mxu0 %v360
    %410 = vmatprep.subr.mxu0 0.0
    %411 = vmatpush1.msra.mxu0 %v361
    %412 = vmatprep.subr.mxu0 0.0
    %413 = vmatpush1.msra.mxu0 %v362
    %414 = vmatprep.subr.mxu0 0.0
    %415 = vmatpush1.msra.mxu0 %v363
    %416 = vmatprep.subr.mxu0 0.0
    %417 = vmatpush1.msra.mxu0 %v364
    %418 = vmatprep.subr.mxu0 0.0
    %419 = vmatpush1.msra.mxu0 %v365
    %420 = vmatprep.subr.mxu0 0.0
    %421 = vmatpush1.msra.mxu0 %v366
    %422 = vmatprep.subr.mxu0 0.0
    %423 = vmatpush1.msra.mxu0 %v367
    %424 = vmatprep.subr.mxu0 0.0
    %425 = vmatpush1.msra.mxu0 %v368
    %426 = vmatprep.subr.mxu0 0.0
    %427 = vmatpush1.msra.mxu0 %v369
    %428 = vmatprep.subr.mxu0 0.0
    %429 = vmatpush1.msra.mxu0 %v370
    %430 = vmatprep.subr.mxu0 0.0
    %431 = vmatpush1.msra.mxu0 %v371
    %432 = vmatprep.subr.mxu0 0.0
    %433 = vmatpush1.msra.mxu0 %v372
    %434 = vmatprep.subr.mxu0 0.0
    %435 = vmatpush1.msra.mxu0 %v373
    %436 = vmatprep.subr.mxu0 0.0
    %437 = vmatpush1.msra.mxu0 %v374
    %438 = vmatprep.subr.mxu0 0.0
    %439 = vmatpush1.msra.mxu0 %v375
    %440 = vmatprep.subr.mxu0 0.0
    %441 = vmatpush1.msra.mxu0 %v376
    %442 = vmatprep.subr.mxu0 0.0
    %443 = vmatpush1.msra.mxu0 %v377
    %444 = vmatprep.subr.mxu0 0.0
    %445 = vmatpush1.msra.mxu0 %v378
    %446 = vmatprep.subr.mxu0 0.0
    %447 = vmatpush1.msra.mxu0 %v379
    %448 = vmatprep.subr.mxu0 0.0
    %449 = vmatpush1.msra.mxu0 %v380
    %450 = vmatprep.mubr.f32.mxu0 %v345
    %451 = vmatmul.mubr.f32.gmra.mrb[0].mxu0 %v344
    %v452 = vpop.f32.mrb[0].mxu0
    %v453 = vadd.f32 %v385, %v452
    %v454 = vpop.f32.mrb[0].mxu0
    %455 = vmatprep.mubr.f32.mxu0 %v347
    %456 = vmatmul.mubr.f32.gmra.mrb[0].mxu0 %v346
    %v457 = vpop.f32.mrb[0].mxu0
    %v458 = vadd.f32 %v385, %v457
    %v459 = vpop.f32.mrb[0].mxu0
    %460 = vdwg.mxu0
    %v461 = vmax.f32 %v453, 0.0
    %v462 = vmax.f32 %v458, 0.0
    %v463 = vld [vmem:[%s7 + $0x1] sm:$0x1]
    %v464 = vlaneseq
    %v465 = vshrl.u32 %v464, 7
    %v466 = vsub.s32 0, %v465
    %v467 = vrot.slane %v463, %v466
    %v468 = vmul.f32 %v461, %v467
    %v469 = vmul.f32 %v462, %v467
    %v470 = vsel %vm255, %v468, 0.0
    %471 = vadd.xlane.f32.xlu0 %v470
    %v472 = vpop.xlane.xlu0 %471
    %v473 = vsel %vm255, %v469, 0.0
    %474 = vadd.xlane.f32.xlu0 %v473
    %v475 = vpop.xlane.xlu0 %474
    %478 = vrot.lane.b32.xlu0 %v468, 64
    %v479 = vpop.permute.xlu0 %478
    %480 = vrot.lane.b32.xlu0 %v469, 64
    %v481 = vpop.permute.xlu0 %480
    %v484 = vsel %vm255, %v479, 0.0
    %485 = vadd.xlane.f32.xlu0 %v484
    %v486 = vpop.xlane.xlu0 %485
    %v487 = vsel %vm255, %v481, 0.0
    %488 = vadd.xlane.f32.xlu0 %v487
    %v489 = vpop.xlane.xlu0 %488
    %vm490 = vcmp.eq.s32.totalorder %v59, 1
    %v491 = vsel %vm490, %v472, %v277
    %v492 = vsel %vm490, %v475, %v278
    %v493 = vsel %vm490, %v486, %v279
    %v494 = vsel %vm490, %v489, %v280
    %s495 = scalar_lea.vmem %s2, 2
    %v496 = vld [vmem:[%s495] ss:$4 sm:$0x3]
    %497 = vset.pattern.permute.xlu0 2
    %498 = vperm.xlu0 %497, %v47
    %v499 = vpop.permute.xlu0 %498
    %501 = vset.pattern.permute.xlu0 2
    %502 = vperm.xlu0 %501, %v48
    %v503 = vpop.permute.xlu0 %502
    %v506 = vlaneseq
    %v507 = vshrl.u32 %v506, 7
    %v508 = vsub.s32 0, %v507
    %v509 = vrot.slane %v496, %v508
    %v510 = vlaneseq
    %v511 = vshrl.u32 %v510, 7
    %v512 = vsub.s32 1, %v511
    %v513 = vrot.slane %v496, %v512
    %v516 = vmul.f32 %v499, %v509
    %v517 = vmul.f32 %v499, %v513
    %v518 = vmul.f32 %v503, %v509
    %v519 = vmul.f32 %v503, %v513
    %s520 = scalar_lea.vmem %s3, 2
    %v521 = vld [vmem:[%s520] ss:$4 sm:$0x3]
    %v523 = vlaneseq
    %v524 = vshrl.u32 %v523, 7
    %v525 = vsub.s32 0, %v524
    %v526 = vrot.slane %v521, %v525
    %v527 = vlaneseq
    %v528 = vshrl.u32 %v527, 7
    %v529 = vsub.s32 1, %v528
    %v530 = vrot.slane %v521, %v529
    %v533 = vmul.f32 %v89, %v526
    %v534 = vmul.f32 %v89, %v530
    %v535 = vmul.f32 %v93, %v526
    %v536 = vmul.f32 %v93, %v530
    %v537 = vadd.f32 %v516, %v533
    %v538 = vadd.f32 %v517, %v534
    %v539 = vadd.f32 %v518, %v535
    %v540 = vadd.f32 %v519, %v536
    %s541 = scalar_lea.vmem %s4, 2
    %v542 = vld [vmem:[%s541] ss:$4 sm:$0x3]
    %v544 = vlaneseq
    %v545 = vshrl.u32 %v544, 7
    %v546 = vsub.s32 0, %v545
    %v547 = vrot.slane %v542, %v546
    %v548 = vlaneseq
    %v549 = vshrl.u32 %v548, 7
    %v550 = vsub.s32 1, %v549
    %v551 = vrot.slane %v542, %v550
    %v554 = vadd.f32 %v537, %v547
    %v555 = vadd.f32 %v538, %v551
    %v556 = vadd.f32 %v539, %v547
    %v557 = vadd.f32 %v540, %v551
    %v558 = vmax.f32 %v554, 0.0
    %v559 = vmax.f32 %v555, 0.0
    %v560 = vmax.f32 %v556, 0.0
    %v561 = vmax.f32 %v557, 0.0
    %s562 = scalar_lea.vmem [#allocation2], 512
    %v563 = vld [vmem:[%s562] sm:$0xff]
    %v564 = vld [vmem:[%s562 + $0x8] sm:$0xff]
    %v565 = vld [vmem:[%s562 + $0x10] sm:$0xff]
    %v566 = vld [vmem:[%s562 + $0x18] sm:$0xff]
    %v567 = vld [vmem:[%s562 + $0x20] sm:$0xff]
    %v568 = vld [vmem:[%s562 + $0x28] sm:$0xff]
    %v569 = vld [vmem:[%s562 + $0x30] sm:$0xff]
    %v570 = vld [vmem:[%s562 + $0x38] sm:$0xff]
    %v571 = vld [vmem:[%s562 + $0x40] sm:$0xff]
    %v572 = vld [vmem:[%s562 + $0x48] sm:$0xff]
    %v573 = vld [vmem:[%s562 + $0x50] sm:$0xff]
    %v574 = vld [vmem:[%s562 + $0x58] sm:$0xff]
    %v575 = vld [vmem:[%s562 + $0x60] sm:$0xff]
    %v576 = vld [vmem:[%s562 + $0x68] sm:$0xff]
    %v577 = vld [vmem:[%s562 + $0x70] sm:$0xff]
    %v578 = vld [vmem:[%s562 + $0x78] sm:$0xff]
    %v579 = vld [vmem:[%s562 + $0x80] sm:$0xff]
    %v580 = vld [vmem:[%s562 + $0x88] sm:$0xff]
    %v581 = vld [vmem:[%s562 + $0x90] sm:$0xff]
    %v582 = vld [vmem:[%s562 + $0x98] sm:$0xff]
    %v583 = vld [vmem:[%s562 + $0xa0] sm:$0xff]
    %v584 = vld [vmem:[%s562 + $0xa8] sm:$0xff]
    %v585 = vld [vmem:[%s562 + $0xb0] sm:$0xff]
    %v586 = vld [vmem:[%s562 + $0xb8] sm:$0xff]
    %v587 = vld [vmem:[%s562 + $0xc0] sm:$0xff]
    %v588 = vld [vmem:[%s562 + $0xc8] sm:$0xff]
    %v589 = vld [vmem:[%s562 + $0xd0] sm:$0xff]
    %v590 = vld [vmem:[%s562 + $0xd8] sm:$0xff]
    %v591 = vld [vmem:[%s562 + $0xe0] sm:$0xff]
    %v592 = vld [vmem:[%s562 + $0xe8] sm:$0xff]
    %v593 = vld [vmem:[%s562 + $0xf0] sm:$0xff]
    %v594 = vld [vmem:[%s562 + $0xf8] sm:$0xff]
    %v595 = vld [vmem:[%s6 + $0x2] sm:$0x1]
    %v596 = vlaneseq
    %v597 = vshrl.u32 %v596, 7
    %v598 = vsub.s32 0, %v597
    %v599 = vrot.slane %v595, %v598
    %600 = vmatprep.subr.mxu0 0.0
    %601 = vmatpush1.msra.mxu0 %v563
    %602 = vmatprep.subr.mxu0 0.0
    %603 = vmatpush1.msra.mxu0 %v564
    %604 = vmatprep.subr.mxu0 0.0
    %605 = vmatpush1.msra.mxu0 %v565
    %606 = vmatprep.subr.mxu0 0.0
    %607 = vmatpush1.msra.mxu0 %v566
    %608 = vmatprep.subr.mxu0 0.0
    %609 = vmatpush1.msra.mxu0 %v567
    %610 = vmatprep.subr.mxu0 0.0
    %611 = vmatpush1.msra.mxu0 %v568
    %612 = vmatprep.subr.mxu0 0.0
    %613 = vmatpush1.msra.mxu0 %v569
    %614 = vmatprep.subr.mxu0 0.0
    %615 = vmatpush1.msra.mxu0 %v570
    %616 = vmatprep.subr.mxu0 0.0
    %617 = vmatpush1.msra.mxu0 %v571
    %618 = vmatprep.subr.mxu0 0.0
    %619 = vmatpush1.msra.mxu0 %v572
    %620 = vmatprep.subr.mxu0 0.0
    %621 = vmatpush1.msra.mxu0 %v573
    %622 = vmatprep.subr.mxu0 0.0
    %623 = vmatpush1.msra.mxu0 %v574
    %624 = vmatprep.subr.mxu0 0.0
    %625 = vmatpush1.msra.mxu0 %v575
    %626 = vmatprep.subr.mxu0 0.0
    %627 = vmatpush1.msra.mxu0 %v576
    %628 = vmatprep.subr.mxu0 0.0
    %629 = vmatpush1.msra.mxu0 %v577
    %630 = vmatprep.subr.mxu0 0.0
    %631 = vmatpush1.msra.mxu0 %v578
    %632 = vmatprep.subr.mxu0 0.0
    %633 = vmatpush1.msra.mxu0 %v579
    %634 = vmatprep.subr.mxu0 0.0
    %635 = vmatpush1.msra.mxu0 %v580
    %636 = vmatprep.subr.mxu0 0.0
    %637 = vmatpush1.msra.mxu0 %v581
    %638 = vmatprep.subr.mxu0 0.0
    %639 = vmatpush1.msra.mxu0 %v582
    %640 = vmatprep.subr.mxu0 0.0
    %641 = vmatpush1.msra.mxu0 %v583
    %642 = vmatprep.subr.mxu0 0.0
    %643 = vmatpush1.msra.mxu0 %v584
    %644 = vmatprep.subr.mxu0 0.0
    %645 = vmatpush1.msra.mxu0 %v585
    %646 = vmatprep.subr.mxu0 0.0
    %647 = vmatpush1.msra.mxu0 %v586
    %648 = vmatprep.subr.mxu0 0.0
    %649 = vmatpush1.msra.mxu0 %v587
    %650 = vmatprep.subr.mxu0 0.0
    %651 = vmatpush1.msra.mxu0 %v588
    %652 = vmatprep.subr.mxu0 0.0
    %653 = vmatpush1.msra.mxu0 %v589
    %654 = vmatprep.subr.mxu0 0.0
    %655 = vmatpush1.msra.mxu0 %v590
    %656 = vmatprep.subr.mxu0 0.0
    %657 = vmatpush1.msra.mxu0 %v591
    %658 = vmatprep.subr.mxu0 0.0
    %659 = vmatpush1.msra.mxu0 %v592
    %660 = vmatprep.subr.mxu0 0.0
    %661 = vmatpush1.msra.mxu0 %v593
    %662 = vmatprep.subr.mxu0 0.0
    %663 = vmatpush1.msra.mxu0 %v594
    %664 = vmatprep.mubr.f32.mxu0 %v559
    %665 = vmatmul.mubr.f32.gmra.mrb[0].mxu0 %v558
    %v666 = vpop.f32.mrb[0].mxu0
    %v667 = vadd.f32 %v599, %v666
    %v668 = vpop.f32.mrb[0].mxu0
    %669 = vmatprep.mubr.f32.mxu0 %v561
    %670 = vmatmul.mubr.f32.gmra.mrb[0].mxu0 %v560
    %v671 = vpop.f32.mrb[0].mxu0
    %v672 = vadd.f32 %v599, %v671
    %v673 = vpop.f32.mrb[0].mxu0
    %674 = vdwg.mxu0
    %v675 = vmax.f32 %v667, 0.0
    %v676 = vmax.f32 %v672, 0.0
    %v677 = vld [vmem:[%s7 + $0x2] sm:$0x1]
    %v678 = vlaneseq
    %v679 = vshrl.u32 %v678, 7
    %v680 = vsub.s32 0, %v679
    %v681 = vrot.slane %v677, %v680
    %v682 = vmul.f32 %v675, %v681
    %v683 = vmul.f32 %v676, %v681
    %v684 = vsel %vm255, %v682, 0.0
    %685 = vadd.xlane.f32.xlu0 %v684
    %v686 = vpop.xlane.xlu0 %685
    %v687 = vsel %vm255, %v683, 0.0
    %688 = vadd.xlane.f32.xlu0 %v687
    %v689 = vpop.xlane.xlu0 %688
    %692 = vrot.lane.b32.xlu0 %v682, 64
    %v693 = vpop.permute.xlu0 %692
    %694 = vrot.lane.b32.xlu0 %v683, 64
    %v695 = vpop.permute.xlu0 %694
    %v698 = vsel %vm255, %v693, 0.0
    %699 = vadd.xlane.f32.xlu0 %v698
    %v700 = vpop.xlane.xlu0 %699
    %v701 = vsel %vm255, %v695, 0.0
    %702 = vadd.xlane.f32.xlu0 %v701
    %v703 = vpop.xlane.xlu0 %702
    %vm704 = vcmp.eq.s32.totalorder %v59, 2
    %v705 = vsel %vm704, %v686, %v491
    %v706 = vsel %vm704, %v689, %v492
    %v707 = vsel %vm704, %v700, %v493
    %v708 = vsel %vm704, %v703, %v494
    %s709 = scalar_lea.vmem %s2, 3
    %v710 = vld [vmem:[%s709] ss:$4 sm:$0x3]
    %711 = vset.pattern.permute.xlu0 3
    %712 = vperm.xlu0 %711, %v47
    %v713 = vpop.permute.xlu0 %712
    %715 = vset.pattern.permute.xlu0 3
    %716 = vperm.xlu0 %715, %v48
    %v717 = vpop.permute.xlu0 %716
    %v720 = vlaneseq
    %v721 = vshrl.u32 %v720, 7
    %v722 = vsub.s32 0, %v721
    %v723 = vrot.slane %v710, %v722
    %v724 = vlaneseq
    %v725 = vshrl.u32 %v724, 7
    %v726 = vsub.s32 1, %v725
    %v727 = vrot.slane %v710, %v726
    %v730 = vmul.f32 %v713, %v723
    %v731 = vmul.f32 %v713, %v727
    %v732 = vmul.f32 %v717, %v723
    %v733 = vmul.f32 %v717, %v727
    %s734 = scalar_lea.vmem %s3, 3
    %v735 = vld [vmem:[%s734] ss:$4 sm:$0x3]
    %v737 = vlaneseq
    %v738 = vshrl.u32 %v737, 7
    %v739 = vsub.s32 0, %v738
    %v740 = vrot.slane %v735, %v739
    %v741 = vlaneseq
    %v742 = vshrl.u32 %v741, 7
    %v743 = vsub.s32 1, %v742
    %v744 = vrot.slane %v735, %v743
    %v747 = vmul.f32 %v89, %v740
    %v748 = vmul.f32 %v89, %v744
    %v749 = vmul.f32 %v93, %v740
    %v750 = vmul.f32 %v93, %v744
    %v751 = vadd.f32 %v730, %v747
    %v752 = vadd.f32 %v731, %v748
    %v753 = vadd.f32 %v732, %v749
    %v754 = vadd.f32 %v733, %v750
    %s755 = scalar_lea.vmem %s4, 3
    %v756 = vld [vmem:[%s755] ss:$4 sm:$0x3]
    %v758 = vlaneseq
    %v759 = vshrl.u32 %v758, 7
    %v760 = vsub.s32 0, %v759
    %v761 = vrot.slane %v756, %v760
    %v762 = vlaneseq
    %v763 = vshrl.u32 %v762, 7
    %v764 = vsub.s32 1, %v763
    %v765 = vrot.slane %v756, %v764
    %v768 = vadd.f32 %v751, %v761
    %v769 = vadd.f32 %v752, %v765
    %v770 = vadd.f32 %v753, %v761
    %v771 = vadd.f32 %v754, %v765
    %v772 = vmax.f32 %v768, 0.0
    %v773 = vmax.f32 %v769, 0.0
    %v774 = vmax.f32 %v770, 0.0
    %v775 = vmax.f32 %v771, 0.0
    %s776 = scalar_lea.vmem [#allocation2], 768
    %v777 = vld [vmem:[%s776] sm:$0xff]
    %v778 = vld [vmem:[%s776 + $0x8] sm:$0xff]
    %v779 = vld [vmem:[%s776 + $0x10] sm:$0xff]
    %v780 = vld [vmem:[%s776 + $0x18] sm:$0xff]
    %v781 = vld [vmem:[%s776 + $0x20] sm:$0xff]
    %v782 = vld [vmem:[%s776 + $0x28] sm:$0xff]
    %v783 = vld [vmem:[%s776 + $0x30] sm:$0xff]
    %v784 = vld [vmem:[%s776 + $0x38] sm:$0xff]
    %v785 = vld [vmem:[%s776 + $0x40] sm:$0xff]
    %v786 = vld [vmem:[%s776 + $0x48] sm:$0xff]
    %v787 = vld [vmem:[%s776 + $0x50] sm:$0xff]
    %v788 = vld [vmem:[%s776 + $0x58] sm:$0xff]
    %v789 = vld [vmem:[%s776 + $0x60] sm:$0xff]
    %v790 = vld [vmem:[%s776 + $0x68] sm:$0xff]
    %v791 = vld [vmem:[%s776 + $0x70] sm:$0xff]
    %v792 = vld [vmem:[%s776 + $0x78] sm:$0xff]
    %v793 = vld [vmem:[%s776 + $0x80] sm:$0xff]
    %v794 = vld [vmem:[%s776 + $0x88] sm:$0xff]
    %v795 = vld [vmem:[%s776 + $0x90] sm:$0xff]
    %v796 = vld [vmem:[%s776 + $0x98] sm:$0xff]
    %v797 = vld [vmem:[%s776 + $0xa0] sm:$0xff]
    %v798 = vld [vmem:[%s776 + $0xa8] sm:$0xff]
    %v799 = vld [vmem:[%s776 + $0xb0] sm:$0xff]
    %v800 = vld [vmem:[%s776 + $0xb8] sm:$0xff]
    %v801 = vld [vmem:[%s776 + $0xc0] sm:$0xff]
    %v802 = vld [vmem:[%s776 + $0xc8] sm:$0xff]
    %v803 = vld [vmem:[%s776 + $0xd0] sm:$0xff]
    %v804 = vld [vmem:[%s776 + $0xd8] sm:$0xff]
    %v805 = vld [vmem:[%s776 + $0xe0] sm:$0xff]
    %v806 = vld [vmem:[%s776 + $0xe8] sm:$0xff]
    %v807 = vld [vmem:[%s776 + $0xf0] sm:$0xff]
    %v808 = vld [vmem:[%s776 + $0xf8] sm:$0xff]
    %v809 = vld [vmem:[%s6 + $0x3] sm:$0x1]
    %v810 = vlaneseq
    %v811 = vshrl.u32 %v810, 7
    %v812 = vsub.s32 0, %v811
    %v813 = vrot.slane %v809, %v812
    %814 = vmatprep.subr.mxu0 0.0
    %815 = vmatpush1.msra.mxu0 %v777
    %816 = vmatprep.subr.mxu0 0.0
    %817 = vmatpush1.msra.mxu0 %v778
    %818 = vmatprep.subr.mxu0 0.0
    %819 = vmatpush1.msra.mxu0 %v779
    %820 = vmatprep.subr.mxu0 0.0
    %821 = vmatpush1.msra.mxu0 %v780
    %822 = vmatprep.subr.mxu0 0.0
    %823 = vmatpush1.msra.mxu0 %v781
    %824 = vmatprep.subr.mxu0 0.0
    %825 = vmatpush1.msra.mxu0 %v782
    %826 = vmatprep.subr.mxu0 0.0
    %827 = vmatpush1.msra.mxu0 %v783
    %828 = vmatprep.subr.mxu0 0.0
    %829 = vmatpush1.msra.mxu0 %v784
    %830 = vmatprep.subr.mxu0 0.0
    %831 = vmatpush1.msra.mxu0 %v785
    %832 = vmatprep.subr.mxu0 0.0
    %833 = vmatpush1.msra.mxu0 %v786
    %834 = vmatprep.subr.mxu0 0.0
    %835 = vmatpush1.msra.mxu0 %v787
    %836 = vmatprep.subr.mxu0 0.0
    %837 = vmatpush1.msra.mxu0 %v788
    %838 = vmatprep.subr.mxu0 0.0
    %839 = vmatpush1.msra.mxu0 %v789
    %840 = vmatprep.subr.mxu0 0.0
    %841 = vmatpush1.msra.mxu0 %v790
    %842 = vmatprep.subr.mxu0 0.0
    %843 = vmatpush1.msra.mxu0 %v791
    %844 = vmatprep.subr.mxu0 0.0
    %845 = vmatpush1.msra.mxu0 %v792
    %846 = vmatprep.subr.mxu0 0.0
    %847 = vmatpush1.msra.mxu0 %v793
    %848 = vmatprep.subr.mxu0 0.0
    %849 = vmatpush1.msra.mxu0 %v794
    %850 = vmatprep.subr.mxu0 0.0
    %851 = vmatpush1.msra.mxu0 %v795
    %852 = vmatprep.subr.mxu0 0.0
    %853 = vmatpush1.msra.mxu0 %v796
    %854 = vmatprep.subr.mxu0 0.0
    %855 = vmatpush1.msra.mxu0 %v797
    %856 = vmatprep.subr.mxu0 0.0
    %857 = vmatpush1.msra.mxu0 %v798
    %858 = vmatprep.subr.mxu0 0.0
    %859 = vmatpush1.msra.mxu0 %v799
    %860 = vmatprep.subr.mxu0 0.0
    %861 = vmatpush1.msra.mxu0 %v800
    %862 = vmatprep.subr.mxu0 0.0
    %863 = vmatpush1.msra.mxu0 %v801
    %864 = vmatprep.subr.mxu0 0.0
    %865 = vmatpush1.msra.mxu0 %v802
    %866 = vmatprep.subr.mxu0 0.0
    %867 = vmatpush1.msra.mxu0 %v803
    %868 = vmatprep.subr.mxu0 0.0
    %869 = vmatpush1.msra.mxu0 %v804
    %870 = vmatprep.subr.mxu0 0.0
    %871 = vmatpush1.msra.mxu0 %v805
    %872 = vmatprep.subr.mxu0 0.0
    %873 = vmatpush1.msra.mxu0 %v806
    %874 = vmatprep.subr.mxu0 0.0
    %875 = vmatpush1.msra.mxu0 %v807
    %876 = vmatprep.subr.mxu0 0.0
    %877 = vmatpush1.msra.mxu0 %v808
    %878 = vmatprep.mubr.f32.mxu0 %v773
    %879 = vmatmul.mubr.f32.gmra.mrb[0].mxu0 %v772
    %v880 = vpop.f32.mrb[0].mxu0
    %v881 = vadd.f32 %v813, %v880
    %v882 = vpop.f32.mrb[0].mxu0
    %883 = vmatprep.mubr.f32.mxu0 %v775
    %884 = vmatmul.mubr.f32.gmra.mrb[0].mxu0 %v774
    %v885 = vpop.f32.mrb[0].mxu0
    %v886 = vadd.f32 %v813, %v885
    %v887 = vpop.f32.mrb[0].mxu0
    %888 = vdwg.mxu0
    %v889 = vmax.f32 %v881, 0.0
    %v890 = vmax.f32 %v886, 0.0
    %v891 = vld [vmem:[%s7 + $0x3] sm:$0x1]
    %v892 = vlaneseq
    %v893 = vshrl.u32 %v892, 7
    %v894 = vsub.s32 0, %v893
    %v895 = vrot.slane %v891, %v894
    %v896 = vmul.f32 %v889, %v895
    %v897 = vmul.f32 %v890, %v895
    %v898 = vsel %vm255, %v896, 0.0
    %899 = vadd.xlane.f32.xlu0 %v898
    %v900 = vpop.xlane.xlu0 %899
    %v901 = vsel %vm255, %v897, 0.0
    %902 = vadd.xlane.f32.xlu0 %v901
    %v903 = vpop.xlane.xlu0 %902
    %906 = vrot.lane.b32.xlu0 %v896, 64
    %v907 = vpop.permute.xlu0 %906
    %908 = vrot.lane.b32.xlu0 %v897, 64
    %v909 = vpop.permute.xlu0 %908
    %v912 = vsel %vm255, %v907, 0.0
    %913 = vadd.xlane.f32.xlu0 %v912
    %v914 = vpop.xlane.xlu0 %913
    %v915 = vsel %vm255, %v909, 0.0
    %916 = vadd.xlane.f32.xlu0 %v915
    %v917 = vpop.xlane.xlu0 %916
    %vm918 = vcmp.eq.s32.totalorder %v59, 3
    %v919 = vsel %vm918, %v900, %v705
    %v920 = vsel %vm918, %v903, %v706
    %v921 = vsel %vm918, %v914, %v707
    %v922 = vsel %vm918, %v917, %v708
    %vm923 = vcmask 31744
    %924 = vst.msk [vmem:[%s8] sm:$0xff] %vm923, %v56
    %925 = vst.msk [vmem:[%s8 + $0x8] sm:$0xff] %vm923, %v57
    %926 = vst.msk [vmem:[%s9] sm:$0xff] %vm923, %v919
    %927 = vst.msk [vmem:[%s9 + $0x8] sm:$0xff] %vm923, %v920
    %928 = vst.msk [vmem:[%s10] sm:$0xff] %vm923, %v921
    %929 = vst.msk [vmem:[%s10 + $0x8] sm:$0xff] %vm923, %v922
    %v930 = vadd.f32 %v56, %v919
    %v931 = vadd.f32 %v57, %v920
    %v932 = vadd.f32 %v930, %v921
    %v933 = vadd.f32 %v931, %v922
    %v934 = vsel %vm923, %v932, 0.0
    %935 = vadd.xlane.f32.xlu0 %v934
    %v936 = vpop.xlane.xlu0 %935
    %v937 = vsel %vm923, %v933, 0.0
    %938 = vadd.xlane.f32.xlu0 %v937
    %v939 = vpop.xlane.xlu0 %938
    %vm940 = vcmask 7168
    %941 = vst.msk [vmem:[%s11] sm:$0xff] %vm940, %v936
    %942 = vst.msk [vmem:[%s11 + $0x8] sm:$0xff] %vm940, %v939
    // Predicated region
    $region38: #{survival_forward.1} parent=1 // pred_check
      _
    $region39: #{survival_forward.1} parent=1 // pred_check_branch
      %944 = sbr.rel (0) target = $region41
    $region40: #{survival_forward.1} parent=1 // pred_region
      _
    $region41: #{survival_forward.1} parent=1 // pred_fallthru
      _
    // Predicated region
    $region42: #{survival_forward.1} parent=1 // pred_check
      _
    $region43: #{survival_forward.1} parent=1 // pred_check_branch
      %946 = sbr.rel (0) target = $region45
    $region44: #{survival_forward.1} parent=1 // pred_region
      _
    $region45: #{survival_forward.1} parent=1 // pred_fallthru
      _
    // Predicated region
    $region46: #{survival_forward.1} parent=1 // pred_check
      _
    $region47: #{survival_forward.1} parent=1 // pred_check_branch
      %948 = sbr.rel (0) target = $region49
    $region48: #{survival_forward.1} parent=1 // pred_region
      _
    $region49: #{survival_forward.1} parent=1 // pred_fallthru
      _
    // Predicated region
    $region50: #{survival_forward.1} parent=1 // pred_check
      _
    $region51: #{survival_forward.1} parent=1 // pred_check_branch
      %950 = sbr.rel (0) target = $region53
    $region52: #{survival_forward.1} parent=1 // pred_region
      _
    $region53: #{survival_forward.1} parent=1 // pred_fallthru
      _
    // Predicated region
    $region54: #{survival_forward.1} parent=1 // pred_check
      _
    $region55: #{survival_forward.1} parent=1 // pred_check_branch
      %952 = sbr.rel (0) target = $region57
    $region56: #{survival_forward.1} parent=1 // pred_region
      _
    $region57: #{survival_forward.1} parent=1 // pred_fallthru
      _
    // Predicated region
    $region58: #{survival_forward.1} parent=1 // pred_check
      _
    $region59: #{survival_forward.1} parent=1 // pred_check_branch
      %954 = sbr.rel (0) target = $region61
    $region60: #{survival_forward.1} parent=1 // pred_region
      _
    $region61: #{survival_forward.1} parent=1 // pred_fallthru
      _
    // Predicated region
    $region62: #{survival_forward.1} parent=1 // pred_check
      _
    $region63: #{survival_forward.1} parent=1 // pred_check_branch
      %956 = sbr.rel (0) target = $region65
    $region64: #{survival_forward.1} parent=1 // pred_region
      _
    $region65: #{survival_forward.1} parent=1 // pred_fallthru
      _
    // Predicated region
    $region66: #{survival_forward.1} parent=1 // pred_check
      _
    $region67: #{survival_forward.1} parent=1 // pred_check_branch
      %958 = sbr.rel (0) target = $region69
    $region68: #{survival_forward.1} parent=1 // pred_region
      _
    $region69: #{survival_forward.1} parent=1 // pred_fallthru
      _
    %959 = vsyncpa [#allocation3], 1

</llo_original>
